<compile_context>
chip_gen: v6e
topology: v6e:2x2x1
jax: 0.10.0
libtpu: 0.0.40
codegen_flags: <defaults>
</compile_context>

<pallas_src>
import functools

import jax
import jax.numpy as jnp
import numpy as np
from jax import lax
from jax.experimental import pallas as pl
from jax.experimental.pallas import tpu as pltpu


def _round_up(x, m):
    return ((x + m - 1) // m) * m


def _cdiv(a, b):
    return -(-a // b)


# ----------------------------------------------------------------------------
# Pallas kernel: tile of `tm` output pixels x full Coutp, reducing over tk-wide
# chunks of the K*K*Cin contraction on grid axis 1 (f32 accumulator scratch).
# ----------------------------------------------------------------------------
def _partialconv_kernel(xm_ref, ur_ref, w_ref, *rest, slide_winsize, has_bias):
    if has_bias:
        b_ref, out_ref, acc_ref = rest
    else:
        out_ref, acc_ref = rest

    k = pl.program_id(1)

    @pl.when(k == 0)
    def _():
        acc_ref[...] = jnp.zeros_like(acc_ref)

    # conv2d(inputs*mask, W) == (masked patches) @ Wmat.  Operands stay in
    # their (typically bf16) storage dtype; accumulation is f32 on the MXU.
    acc_ref[...] += jnp.dot(xm_ref[...], w_ref[...],
                            preferred_element_type=jnp.float32)

    @pl.when(k == pl.num_programs(1) - 1)
    def _():
        raw = acc_ref[...]                                      # (tm, Coutp) f32
        # conv2d(mask, ones) is channel-constant -> per-row window-sum column.
        um_raw = ur_ref[...].astype(jnp.float32)                # (tm, 1)
        # EUP approximate reciprocal: the divide rides a free issue slot.
        mask_ratio = slide_winsize * pl.reciprocal(um_raw + 1e-8, approx=True)
        um = jnp.clip(um_raw, 0.0, 1.0)
        mask_ratio = mask_ratio * um
        if has_bias:
            b = b_ref[...].astype(jnp.float32)                  # (1, Coutp)
            # PyTorch: ((conv + b) - b)*mr + b, then *um  ==  (conv*mr + b)*um
            out = (raw * mask_ratio + b) * um
        else:
            out = raw * mask_ratio
        out_ref[...] = out.astype(out_ref.dtype)                # lane-dense store


# ----------------------------------------------------------------------------
# Glue: im2col / window-sum (pure data rearrangement, runs in XLA).
# ----------------------------------------------------------------------------
def _im2col(x_nhwc, K, stride, padding):
    N, H, W, C = x_nhwc.shape
    xp = jnp.pad(x_nhwc, ((0, 0), (padding, padding), (padding, padding), (0, 0)))
    Hout = (H + 2 * padding - K) // stride + 1
    Wout = (W + 2 * padding - K) // stride + 1
    patches = []
    for kh in range(K):
        for kw in range(K):
            patches.append(
                xp[:, kh:kh + Hout * stride:stride, kw:kw + Wout * stride:stride, :])
    p = jnp.stack(patches, axis=3)                 # (N, Hout, Wout, K*K, C)
    return p.reshape(N * Hout * Wout, K * K * C), Hout, Wout


def _window_sum(m_nhwc, K, stride, padding):
    """conv2d(mask, ones(.,Cin,K,K)) per output pixel == K*K*Cin window sum."""
    N, H, W, _ = m_nhwc.shape
    ms = jnp.sum(m_nhwc.astype(jnp.float32), axis=-1)            # (N, H, W)
    msp = jnp.pad(ms, ((0, 0), (padding, padding), (padding, padding)))
    Hout = (H + 2 * padding - K) // stride + 1
    Wout = (W + 2 * padding - K) // stride + 1
    acc = None
    for kh in range(K):
        for kw in range(K):
            sl = msp[:, kh:kh + Hout * stride:stride, kw:kw + Wout * stride:stride]
            acc = sl if acc is None else acc + sl
    return acc                                                   # (N, Hout, Wout)


# ----------------------------------------------------------------------------
# Generation-aware device queries + tile sizing.
# ----------------------------------------------------------------------------
def _vmem_limit_bytes():
    """~3/4 of physical VMEM: ~48 MiB on v7x, ~96 MiB on v5e/v6e."""
    cap = None
    try:
        info = pltpu.get_tpu_info()
        cap = getattr(info, "vmem_capacity_bytes", None)
    except Exception:
        cap = None
    if not cap:
        cap = 64 * 1024 * 1024        # conservative: assume the smallest (v7x) part
    return max(16 * 1024 * 1024, (int(cap) * 3) // 4)


def _num_tensorcores():
    """Best-effort: 2 TensorCores per Pallas device on v4/v5p megacore and v7x."""
    try:
        kind = str(getattr(jax.devices()[0], "device_kind", "")).lower()
        if ("v4" in kind) or ("v5p" in kind) or ("v7" in kind) or ("7x" in kind):
            return 2
    except Exception:
        pass
    return 1


def _choose_tiles(M, P, Coutp, xm_itemsize, out_itemsize, vmem_budget,
                  requested_tm, num_tc):
    lane = 128
    w_itemsize = xm_itemsize
    # Contraction split: largest multiple-of-128 divisor of P whose weight
    # block stays <= ~8 MiB per buffer; otherwise no split (tk == P).
    tk = P
    if P % lane == 0:
        cap = (8 * 1024 * 1024) // max(1, Coutp * w_itemsize)
        cap = max(lane, (min(P, cap) // lane) * lane)
        best = lane
        for cand in range(lane, cap + 1, lane):
            if P % cand == 0:
                best = cand
        tk = best
    tk_lanes = _round_up(tk, lane)

    fixed = 2 * _round_up(tk, 8) * Coutp * w_itemsize       # weights (dbl-buffered)
    fixed += 2 * 8 * Coutp * 4                              # bias block
    per_row = (2 * tk_lanes * xm_itemsize                   # xm tile (dbl-buffered)
               + 2 * lane * 4                               # um column (lane-padded)
               + 2 * Coutp * out_itemsize                   # out tile (dbl-buffered)
               + Coutp * 4)                                 # f32 accumulator scratch
    avail = max(vmem_budget - fixed, 8 * per_row)
    tm = min(int(requested_tm), int(avail // per_row), _round_up(M, 8))
    if tm >= 256:
        tm = (tm // 256) * 256          # full MXU M-dim granularity
    else:
        tm = max(8, (tm // 8) * 8)
    # Only shrink for a second grid step when a second TensorCore exists.
    if num_tc >= 2:
        while _cdiv(M, tm) < 2 and tm > 256:
            new_tm = max(256, ((tm // 2) // 256) * 256)
            if new_tm >= tm:
                break
            tm = new_tm
    return max(8, tm), tk


# ----------------------------------------------------------------------------
# Public wrapper.
# ----------------------------------------------------------------------------
def partial_conv2d(inputs, mask, kernel, bias=None, stride=1, padding=0,
                   matmul_dtype=jnp.bfloat16, tm=1024):
    """inputs/mask: (N,Cin,H,W); kernel: (Cout,Cin,K,K); bias: (Cout,) or None.

    Returns (output, update_mask) matching PartialConv2d.forward.
    `matmul_dtype` is the MXU operand dtype (None -> keep inputs.dtype)."""
    N, Cin, H, W = inputs.shape
    Cout, _, K, _ = kernel.shape
    slide_winsize = float(Cin * K * K)
    has_bias = bias is not None
    if mask is None:
        mask = jnp.ones_like(inputs)
    if matmul_dtype is None:
        matmul_dtype = inputs.dtype

    x_nhwc = jnp.transpose(inputs, (0, 2, 3, 1))
    m_nhwc = jnp.transpose(mask, (0, 2, 3, 1))

    # inputs*mask fused BEFORE im2col and narrowed to the MXU operand dtype, so
    # only one (M, K*K*Cin) patch matrix (at matmul_dtype width) hits HBM.
    xm_pat, Hout, Wout = _im2col((x_nhwc * m_nhwc).astype(matmul_dtype),
                                 K, stride, padding)
    M, P = xm_pat.shape

    # Channel-constant mask-update conv -> per-output-pixel window sum (f32).
    um_raw = _window_sum(m_nhwc, K, stride, padding).reshape(M, 1)

    # Lane-dense output / weights: pad Cout up to a multiple of 128.
    Coutp = _round_up(Cout, 128)
    w_mat = jnp.transpose(kernel, (2, 3, 1, 0)).reshape(P, Cout)
    w_mat = jnp.pad(w_mat, ((0, 0), (0, Coutp - Cout))).astype(matmul_dtype)

    vmem_limit = _vmem_limit_bytes()
    tm, tk = _choose_tiles(
        M, P, Coutp,
        xm_itemsize=jnp.dtype(matmul_dtype).itemsize,
        out_itemsize=jnp.dtype(inputs.dtype).itemsize,
        vmem_budget=vmem_limit - 4 * 1024 * 1024,
        requested_tm=tm, num_tc=_num_tensorcores())
    grid_m = _cdiv(M, tm)          # ragged tail handled by Pallas (no pad copy)
    grid_k = P // tk               # tk divides P by construction

    args = [xm_pat, um_raw, w_mat]
    in_specs = [
        pl.BlockSpec((tm, tk), lambda i, k: (i, k)),
        pl.BlockSpec((tm, 1), lambda i, k: (i, 0)),
        pl.BlockSpec((tk, Coutp), lambda i, k: (k, 0)),
    ]
    if has_bias:
        b_mat = jnp.pad(bias.reshape(1, Cout).astype(jnp.float32),
                        ((0, 0), (0, Coutp - Cout)))
        args.append(b_mat)
        in_specs.append(pl.BlockSpec((1, Coutp), lambda i, k: (0, 0)))

    kern = functools.partial(_partialconv_kernel,
                             slide_winsize=slide_winsize, has_bias=has_bias)

    out_flat = pl.pallas_call(
        kern,
        out_shape=jax.ShapeDtypeStruct((M, Coutp), inputs.dtype),
        grid_spec=pltpu.PrefetchScalarGridSpec(
            num_scalar_prefetch=0,
            grid=(grid_m, grid_k),
            in_specs=in_specs,
            out_specs=pl.BlockSpec((tm, Coutp), lambda i, k: (i, 0)),
            scratch_shapes=[pltpu.VMEM((tm, Coutp), jnp.float32)],
        ),
        compiler_params=pltpu.CompilerParams(
            dimension_semantics=("parallel", "arbitrary"),
            vmem_limit_bytes=vmem_limit,
        ),
    )(*args)

    out = out_flat[:, :Cout].reshape(N, Hout, Wout, Cout).transpose(0, 3, 1, 2)

    # update_mask is channel-constant: derived here, no kernel writeback needed.
    umc = jnp.clip(um_raw, 0.0, 1.0).reshape(N, Hout, Wout, 1)
    um = jnp.broadcast_to(umc, (N, Hout, Wout, Cout)).transpose(0, 3, 1, 2)
    return out, um.astype(inputs.dtype)


# ----------------------------------------------------------------------------
# Pure-JAX reference (mirrors the PyTorch forward).  conv_dtype lets the
# reference model the intentional bf16 operand rounding of the fast path.
# ----------------------------------------------------------------------------
def partial_conv2d_ref(inputs, mask, kernel, bias, stride, padding, conv_dtype=None):
    Cout, Cin, K, _ = kernel.shape
    dn = ("NCHW", "OIHW", "NCHW")
    strides = (stride, stride)
    pads = [(padding, padding), (padding, padding)]
    ones_w = jnp.ones(kernel.shape, jnp.float32)
    um = lax.conv_general_dilated(mask.astype(jnp.float32), ones_w, strides, pads,
                                  dimension_numbers=dn,
                                  precision=lax.Precision.HIGHEST)
    slide = float(Cin * K * K)
    mr = slide / (um + 1e-8)
    umc = jnp.clip(um, 0.0, 1.0)
    mr = mr * umc
    xm = (inputs * mask).astype(jnp.float32)
    kern = kernel.astype(jnp.float32)
    if conv_dtype is not None:
        xm = xm.astype(conv_dtype).astype(jnp.float32)
        kern = kern.astype(conv_dtype).astype(jnp.float32)
    conv = lax.conv_general_dilated(xm, kern, strides, pads, dimension_numbers=dn,
                                    precision=lax.Precision.HIGHEST)
    if bias is not None:
        bv = bias.reshape(1, Cout, 1, 1).astype(jnp.float32)
        out = (conv * mr + bv) * umc
    else:
        out = conv * mr
    return out, umc


if __name__ == "__main__":
    key = jax.random.PRNGKey(0)
    k1, k2, k3, k4 = jax.random.split(key, 4)

    N, Cin, H, W = 2, 4, 16, 16
    Cout, K = 8, 3
    stride, padding = 1, 1

    x = jax.random.normal(k1, (N, Cin, H, W), dtype=jnp.float32)
    mask = (jax.random.uniform(k2, (N, Cin, H, W)) > 0.3).astype(jnp.float32)
    kernel = jax.random.normal(k3, (Cout, Cin, K, K), dtype=jnp.float32) * 0.1
    bias = jax.random.normal(k4, (Cout,), dtype=jnp.float32) * 0.1

    # 1) Biased, masked path with bf16 MXU operands (default, per perf review).
    out, um = partial_conv2d(x, mask, kernel, bias=bias,
                             stride=stride, padding=padding)
    jax.block_until_ready((out, um))
    out_ref, um_ref = partial_conv2d_ref(x, mask, kernel, bias, stride, padding,
                                         conv_dtype=jnp.bfloat16)
    np.testing.assert_allclose(np.asarray(um), np.asarray(um_ref),
                               atol=1e-5, rtol=1e-5)
    np.testing.assert_allclose(np.asarray(out), np.asarray(out_ref),
                               atol=3e-2, rtol=3e-2)

    # 2) Unbiased, default (None) mask path, full-precision matmul operands.
    out2, um2 = partial_conv2d(x, None, kernel, bias=None, stride=stride,
                               padding=padding, matmul_dtype=jnp.float32)
    jax.block_until_ready((out2, um2))
    out2_ref, um2_ref = partial_conv2d_ref(x, jnp.ones_like(x), kernel, None,
                                           stride, padding, conv_dtype=None)
    np.testing.assert_allclose(np.asarray(um2), np.asarray(um2_ref),
                               atol=1e-5, rtol=1e-5)
    np.testing.assert_allclose(np.asarray(out2), np.asarray(out2_ref),
                               atol=3e-2, rtol=3e-2)

    print("KERNEL_OK")
</pallas_src>

<mosaic_0001>
module attributes {stable_mosaic.version = 11 : i64} {
  func.func @_partialconv_kernel(%arg0: i32, %arg1: i32, %arg2: memref<512x36xbf16, #tpu.memory_space<vmem>>, %arg3: memref<512x1xf32, #tpu.memory_space<vmem>>, %arg4: memref<36x128xbf16, #tpu.memory_space<vmem>>, %arg5: memref<1x128xf32, #tpu.memory_space<vmem>>, %arg6: memref<512x128xf32, #tpu.memory_space<vmem>>, %arg7: memref<512x128xf32, #tpu.memory_space<vmem>>) attributes {dimension_semantics = [#tpu.dimension_semantics<parallel>, #tpu.dimension_semantics<arbitrary>], iteration_bounds = array<i64: 1, 1>, scalar_prefetch = 0 : i64, scratch_operands = 1 : i64, tpu.core_type = #tpu.core_type<tc>, window_params = [{transform_indices = @transform_0, window_bounds = array<i64: 512, 36>}, {transform_indices = @transform_1, window_bounds = array<i64: 512, 1>}, {transform_indices = @transform_2, window_bounds = array<i64: 36, 128>}, {pipeline_mode = #tpu.pipeline_mode<synchronous>, transform_indices = @transform_3, window_bounds = array<i64: 1, 128>}, {transform_indices = @transform_4, window_bounds = array<i64: 512, 128>}]} {
    %c0_i32 = arith.constant 0 : i32
    %0 = arith.cmpi eq, %arg1, %c0_i32 : i32
    %1 = arith.extui %0 : i1 to i32
    %c0_i32_0 = arith.constant 0 : i32
    %2 = arith.cmpi ne, %1, %c0_i32_0 : i32
    scf.if %2 {
      %cst_10 = arith.constant 0.000000e+00 : f32
      %12 = vector.broadcast %cst_10 : f32 to vector<512x128xf32>
      %c0_11 = arith.constant 0 : index
      %c0_12 = arith.constant 0 : index
      %13 = vector.load %arg7[%c0_11, %c0_12] : memref<512x128xf32, #tpu.memory_space<vmem>>, vector<512x128xf32>
      tpu.vector_store %arg7[%c0_11, %c0_12], %12 {strides = array<i32>} : memref<512x128xf32, #tpu.memory_space<vmem>>, vector<512x128xf32>,
    } else {
    }
    %c0 = arith.constant 0 : index
    %c0_1 = arith.constant 0 : index
    %3 = vector.load %arg7[%c0, %c0_1] : memref<512x128xf32, #tpu.memory_space<vmem>>, vector<512x128xf32>
    %c0_2 = arith.constant 0 : index
    %c0_3 = arith.constant 0 : index
    %4 = vector.load %arg2[%c0_2, %c0_3] : memref<512x36xbf16, #tpu.memory_space<vmem>>, vector<512x36xbf16>
    %c0_4 = arith.constant 0 : index
    %c0_5 = arith.constant 0 : index
    %5 = vector.load %arg4[%c0_4, %c0_5] : memref<36x128xbf16, #tpu.memory_space<vmem>>, vector<36x128xbf16>
    %cst = arith.constant dense<0.000000e+00> : vector<512x128xf32>
    %6 = tpu.matmul %4, %5, %cst {dimension_numbers = #tpu.dot_dimension_numbers<[1], [0], [0], [1], [0, 0, 1, 1], [], []>} : vector<512x36xbf16>, vector<36x128xbf16>, vector<512x128xf32> -> vector<512x128xf32>
    %7 = arith.addf %3, %6 : vector<512x128xf32>
    %c0_6 = arith.constant 0 : index
    %c0_7 = arith.constant 0 : index
    %8 = vector.load %arg7[%c0_6, %c0_7] : memref<512x128xf32, #tpu.memory_space<vmem>>, vector<512x128xf32>
    tpu.vector_store %arg7[%c0_6, %c0_7], %7 {strides = array<i32>} : memref<512x128xf32, #tpu.memory_space<vmem>>, vector<512x128xf32>,
    %c0_i32_8 = arith.constant 0 : i32
    %9 = arith.cmpi eq, %arg1, %c0_i32_8 : i32
    %10 = arith.extui %9 : i1 to i32
    %c0_i32_9 = arith.constant 0 : i32
    %11 = arith.cmpi ne, %10, %c0_i32_9 : i32
    scf.if %11 {
      %c0_10 = arith.constant 0 : index
      %c0_11 = arith.constant 0 : index
      %12 = vector.load %arg7[%c0_10, %c0_11] : memref<512x128xf32, #tpu.memory_space<vmem>>, vector<512x128xf32>
      %c0_12 = arith.constant 0 : index
      %c0_13 = arith.constant 0 : index
      %13 = vector.load %arg3[%c0_12, %c0_13] : memref<512x1xf32, #tpu.memory_space<vmem>>, vector<512x1xf32>
      %cst_14 = arith.constant 9.99999993E-9 : f32
      %14 = vector.broadcast %cst_14 : f32 to vector<512x1xf32>
      %15 = arith.addf %13, %14 : vector<512x1xf32>
      %16 = tpu.reciprocal %15 {approx = true} : vector<512x1xf32> -> vector<512x1xf32>
      %cst_15 = arith.constant 3.600000e+01 : f32
      %17 = vector.broadcast %cst_15 : f32 to vector<512x1xf32>
      %18 = arith.mulf %17, %16 : vector<512x1xf32>
      %cst_16 = arith.constant 0.000000e+00 : f32
      %cst_17 = arith.constant 1.000000e+00 : f32
      %19 = vector.broadcast %cst_16 : f32 to vector<512x1xf32>
      %20 = arith.maximumf %19, %13 : vector<512x1xf32>
      %21 = vector.broadcast %cst_17 : f32 to vector<512x1xf32>
      %22 = arith.minimumf %21, %20 : vector<512x1xf32>
      %23 = arith.mulf %18, %22 : vector<512x1xf32>
      %c0_18 = arith.constant 0 : index
      %c0_19 = arith.constant 0 : index
      %24 = vector.load %arg5[%c0_18, %c0_19] : memref<1x128xf32, #tpu.memory_space<vmem>>, vector<1x128xf32>
      %25 = vector.broadcast %23 : vector<512x1xf32> to vector<512x128xf32>
      %26 = arith.mulf %12, %25 : vector<512x128xf32>
      %27 = vector.broadcast %24 : vector<1x128xf32> to vector<512x128xf32>
      %28 = arith.addf %26, %27 : vector<512x128xf32>
      %29 = vector.broadcast %22 : vector<512x1xf32> to vector<512x128xf32>
      %30 = arith.mulf %28, %29 : vector<512x128xf32>
      %c0_20 = arith.constant 0 : index
      %c0_21 = arith.constant 0 : index
      %31 = vector.load %arg6[%c0_20, %c0_21] : memref<512x128xf32, #tpu.memory_space<vmem>>, vector<512x128xf32>
      tpu.vector_store %arg6[%c0_20, %c0_21], %30 {strides = array<i32>} : memref<512x128xf32, #tpu.memory_space<vmem>>, vector<512x128xf32>,
    } else {
    }
    return
  }
  func.func @transform_0(%arg0: i32, %arg1: i32) -> (i32, i32) {
    %c0_i32 = arith.constant 0 : i32
    return %arg0, %arg1 : i32, i32
  }
  func.func @transform_1(%arg0: i32, %arg1: i32) -> (i32, i32) {
    %c0_i32 = arith.constant 0 : i32
    %c0_i32_0 = arith.constant 0 : i32
    return %arg0, %c0_i32 : i32, i32
  }
  func.func @transform_2(%arg0: i32, %arg1: i32) -> (i32, i32) {
    %c0_i32 = arith.constant 0 : i32
    %c0_i32_0 = arith.constant 0 : i32
    return %arg1, %c0_i32 : i32, i32
  }
  func.func @transform_3(%arg0: i32, %arg1: i32) -> (i32, i32) {
    %c0_i32 = arith.constant 0 : i32
    %c0_i32_0 = arith.constant 0 : i32
    %c0_i32_1 = arith.constant 0 : i32
    return %c0_i32, %c0_i32_0 : i32, i32
  }
  func.func @transform_4(%arg0: i32, %arg1: i32) -> (i32, i32) {
    %c0_i32 = arith.constant 0 : i32
    %c0_i32_0 = arith.constant 0 : i32
    return %arg0, %c0_i32 : i32, i32
  }
}

</mosaic_0001>

<llo_original>
// kernel: tpu_custom_call.1
$region0: #{tpu_custom_call.1}
  #allocation0 [shape = 'u32[]', space=smem, size = 0x4, offset = 0x4, fixed_abs, tag = 'smem constant byte address 0x4 - core index']
  #allocation1 [shape = 'u32[144,128]{1,0:T(1,128)}', space=vmem, size = 0x12000, scoped, tag = 'internal scratch']
  #allocation2 [shape = 'f32[512,128]{1,0:T(8,128)}', space=vmem, size = 0x40000, scoped, tag = 'scratch operand']
  %s0 = inlined_call_operand.vmem [shape: bf16[512,36], index: 0, kind: input, shape index: {}]
  %s1 = inlined_call_operand.vmem [shape: f32[512,1], index: 1, kind: input, shape index: {}]
  %s2 = inlined_call_operand.vmem [shape: bf16[36,128], index: 2, kind: input, shape index: {}]
  %s3 = inlined_call_operand.vmem [shape: f32[1,128], index: 3, kind: input, shape index: {}]
  %s4 = inlined_call_operand.hbm [shape: f32[512,128], index: 4, kind: output, shape index: {}]
  %s5 = sld [smem:[#allocation0]]
  $region34: #{tpu_custom_call.1} parent=0
    _
  %s7 = ssub.s32 1, %s5
  %s8 = scalar_select 0, %s7, %s5
  $region1: #{tpu_custom_call.1} parent=0
    #allocation3 [shape = 'u8[262144]{0}', space=vmem, size = 0x40000, scoped, tag = 'output window, operand 0, single buffered']
    #allocation4 [shape = 's32[1]{0}', space=sflag, size = 0x4, scoped, tag = 'scoped memory for tpu_custom_call.1']
    %9 = vsyncpa [#allocation4], 0
    // Predicated region
    $region2: #{tpu_custom_call.1} parent=1 // pred_check
      _
    $region3: #{tpu_custom_call.1} parent=1 // pred_check_branch
      %11 = sbr.rel (0) target = $region5
    $region4: #{tpu_custom_call.1} parent=1 // pred_region
      _
    $region5: #{tpu_custom_call.1} parent=1 // pred_fallthru
      _
    // Predicated region
    $region6: #{tpu_custom_call.1} parent=1 // pred_check
      _
    $region7: #{tpu_custom_call.1} parent=1 // pred_check_branch
      %13 = sbr.rel (0) target = $region9
    $region8: #{tpu_custom_call.1} parent=1 // pred_region
      _
    $region9: #{tpu_custom_call.1} parent=1 // pred_fallthru
      _
    // Predicated region
    $region10: #{tpu_custom_call.1} parent=1 // pred_check
      _
    $region11: #{tpu_custom_call.1} parent=1 // pred_check_branch
      %15 = sbr.rel (0) target = $region13
    $region12: #{tpu_custom_call.1} parent=1 // pred_region
      _
    $region13: #{tpu_custom_call.1} parent=1 // pred_fallthru
      _
    // Predicated region
    $region14: #{tpu_custom_call.1} parent=1 // pred_check
      _
    $region15: #{tpu_custom_call.1} parent=1 // pred_check_branch
      %17 = sbr.rel (0) target = $region17
    $region16: #{tpu_custom_call.1} parent=1 // pred_region
      _
    $region17: #{tpu_custom_call.1} parent=1 // pred_fallthru
      _
    %p19 = scmp.eq.s32.totalorder 0, 0
    // Predicated region
    $region18: #{tpu_custom_call.1} parent=1 // pred_check
      %p20 = pneg %p19
    $region19: #{tpu_custom_call.1} parent=1 // pred_check_branch
      %22 = sbr.rel (%p20) target = $region21
    $region20: #{tpu_custom_call.1} parent=1 // pred_region
      %23 = vst [vmem:[#allocation2] sm:$0xff] 0.0
      %24 = vst [vmem:[#allocation2 + $0x8] sm:$0xff] 0.0
      %25 = vst [vmem:[#allocation2 + $0x10] sm:$0xff] 0.0
      %26 = vst [vmem:[#allocation2 + $0x18] sm:$0xff] 0.0
      %27 = vst [vmem:[#allocation2 + $0x20] sm:$0xff] 0.0
      %28 = vst [vmem:[#allocation2 + $0x28] sm:$0xff] 0.0
      %29 = vst [vmem:[#allocation2 + $0x30] sm:$0xff] 0.0
      %30 = vst [vmem:[#allocation2 + $0x38] sm:$0xff] 0.0
      %31 = vst [vmem:[#allocation2 + $0x40] sm:$0xff] 0.0
      %32 = vst [vmem:[#allocation2 + $0x48] sm:$0xff] 0.0
      %33 = vst [vmem:[#allocation2 + $0x50] sm:$0xff] 0.0
      %34 = vst [vmem:[#allocation2 + $0x58] sm:$0xff] 0.0
      %35 = vst [vmem:[#allocation2 + $0x60] sm:$0xff] 0.0
      %36 = vst [vmem:[#allocation2 + $0x68] sm:$0xff] 0.0
      %37 = vst [vmem:[#allocation2 + $0x70] sm:$0xff] 0.0
      %38 = vst [vmem:[#allocation2 + $0x78] sm:$0xff] 0.0
      %39 = vst [vmem:[#allocation2 + $0x80] sm:$0xff] 0.0
      %40 = vst [vmem:[#allocation2 + $0x88] sm:$0xff] 0.0
      %41 = vst [vmem:[#allocation2 + $0x90] sm:$0xff] 0.0
      %42 = vst [vmem:[#allocation2 + $0x98] sm:$0xff] 0.0
      %43 = vst [vmem:[#allocation2 + $0xa0] sm:$0xff] 0.0
      %44 = vst [vmem:[#allocation2 + $0xa8] sm:$0xff] 0.0
      %45 = vst [vmem:[#allocation2 + $0xb0] sm:$0xff] 0.0
      %46 = vst [vmem:[#allocation2 + $0xb8] sm:$0xff] 0.0
      %47 = vst [vmem:[#allocation2 + $0xc0] sm:$0xff] 0.0
      %48 = vst [vmem:[#allocation2 + $0xc8] sm:$0xff] 0.0
      %49 = vst [vmem:[#allocation2 + $0xd0] sm:$0xff] 0.0
      %50 = vst [vmem:[#allocation2 + $0xd8] sm:$0xff] 0.0
      %51 = vst [vmem:[#allocation2 + $0xe0] sm:$0xff] 0.0
      %52 = vst [vmem:[#allocation2 + $0xe8] sm:$0xff] 0.0
      %53 = vst [vmem:[#allocation2 + $0xf0] sm:$0xff] 0.0
      %54 = vst [vmem:[#allocation2 + $0xf8] sm:$0xff] 0.0
      %55 = vst [vmem:[#allocation2 + $0x100] sm:$0xff] 0.0
      %56 = vst [vmem:[#allocation2 + $0x108] sm:$0xff] 0.0
      %57 = vst [vmem:[#allocation2 + $0x110] sm:$0xff] 0.0
      %58 = vst [vmem:[#allocation2 + $0x118] sm:$0xff] 0.0
      %59 = vst [vmem:[#allocation2 + $0x120] sm:$0xff] 0.0
      %60 = vst [vmem:[#allocation2 + $0x128] sm:$0xff] 0.0
      %61 = vst [vmem:[#allocation2 + $0x130] sm:$0xff] 0.0
      %62 = vst [vmem:[#allocation2 + $0x138] sm:$0xff] 0.0
      %63 = vst [vmem:[#allocation2 + $0x140] sm:$0xff] 0.0
      %64 = vst [vmem:[#allocation2 + $0x148] sm:$0xff] 0.0
      %65 = vst [vmem:[#allocation2 + $0x150] sm:$0xff] 0.0
      %66 = vst [vmem:[#allocation2 + $0x158] sm:$0xff] 0.0
      %67 = vst [vmem:[#allocation2 + $0x160] sm:$0xff] 0.0
      %68 = vst [vmem:[#allocation2 + $0x168] sm:$0xff] 0.0
      %69 = vst [vmem:[#allocation2 + $0x170] sm:$0xff] 0.0
      %70 = vst [vmem:[#allocation2 + $0x178] sm:$0xff] 0.0
      %71 = vst [vmem:[#allocation2 + $0x180] sm:$0xff] 0.0
      %72 = vst [vmem:[#allocation2 + $0x188] sm:$0xff] 0.0
      %73 = vst [vmem:[#allocation2 + $0x190] sm:$0xff] 0.0
      %74 = vst [vmem:[#allocation2 + $0x198] sm:$0xff] 0.0
      %75 = vst [vmem:[#allocation2 + $0x1a0] sm:$0xff] 0.0
      %76 = vst [vmem:[#allocation2 + $0x1a8] sm:$0xff] 0.0
      %77 = vst [vmem:[#allocation2 + $0x1b0] sm:$0xff] 0.0
      %78 = vst [vmem:[#allocation2 + $0x1b8] sm:$0xff] 0.0
      %79 = vst [vmem:[#allocation2 + $0x1c0] sm:$0xff] 0.0
      %80 = vst [vmem:[#allocation2 + $0x1c8] sm:$0xff] 0.0
      %81 = vst [vmem:[#allocation2 + $0x1d0] sm:$0xff] 0.0
      %82 = vst [vmem:[#allocation2 + $0x1d8] sm:$0xff] 0.0
      %83 = vst [vmem:[#allocation2 + $0x1e0] sm:$0xff] 0.0
      %84 = vst [vmem:[#allocation2 + $0x1e8] sm:$0xff] 0.0
      %85 = vst [vmem:[#allocation2 + $0x1f0] sm:$0xff] 0.0
      %86 = vst [vmem:[#allocation2 + $0x1f8] sm:$0xff] 0.0
    $region21: #{tpu_custom_call.1} parent=1 // pred_fallthru
      _
    %v87 = vld [vmem:[#allocation2] sm:$0xff]
    %v88 = vld [vmem:[#allocation2 + $0x8] sm:$0xff]
    %v89 = vld [vmem:[#allocation2 + $0x10] sm:$0xff]
    %v90 = vld [vmem:[#allocation2 + $0x18] sm:$0xff]
    %v91 = vld [vmem:[#allocation2 + $0x20] sm:$0xff]
    %v92 = vld [vmem:[#allocation2 + $0x28] sm:$0xff]
    %v93 = vld [vmem:[#allocation2 + $0x30] sm:$0xff]
    %v94 = vld [vmem:[#allocation2 + $0x38] sm:$0xff]
    %v95 = vld [vmem:[#allocation2 + $0x40] sm:$0xff]
    %v96 = vld [vmem:[#allocation2 + $0x48] sm:$0xff]
    %v97 = vld [vmem:[#allocation2 + $0x50] sm:$0xff]
    %v98 = vld [vmem:[#allocation2 + $0x58] sm:$0xff]
    %v99 = vld [vmem:[#allocation2 + $0x60] sm:$0xff]
    %v100 = vld [vmem:[#allocation2 + $0x68] sm:$0xff]
    %v101 = vld [vmem:[#allocation2 + $0x70] sm:$0xff]
    %v102 = vld [vmem:[#allocation2 + $0x78] sm:$0xff]
    %v103 = vld [vmem:[#allocation2 + $0x80] sm:$0xff]
    %v104 = vld [vmem:[#allocation2 + $0x88] sm:$0xff]
    %v105 = vld [vmem:[#allocation2 + $0x90] sm:$0xff]
    %v106 = vld [vmem:[#allocation2 + $0x98] sm:$0xff]
    %v107 = vld [vmem:[#allocation2 + $0xa0] sm:$0xff]
    %v108 = vld [vmem:[#allocation2 + $0xa8] sm:$0xff]
    %v109 = vld [vmem:[#allocation2 + $0xb0] sm:$0xff]
    %v110 = vld [vmem:[#allocation2 + $0xb8] sm:$0xff]
    %v111 = vld [vmem:[#allocation2 + $0xc0] sm:$0xff]
    %v112 = vld [vmem:[#allocation2 + $0xc8] sm:$0xff]
    %v113 = vld [vmem:[#allocation2 + $0xd0] sm:$0xff]
    %v114 = vld [vmem:[#allocation2 + $0xd8] sm:$0xff]
    %v115 = vld [vmem:[#allocation2 + $0xe0] sm:$0xff]
    %v116 = vld [vmem:[#allocation2 + $0xe8] sm:$0xff]
    %v117 = vld [vmem:[#allocation2 + $0xf0] sm:$0xff]
    %v118 = vld [vmem:[#allocation2 + $0xf8] sm:$0xff]
    %v119 = vld [vmem:[#allocation2 + $0x100] sm:$0xff]
    %v120 = vld [vmem:[#allocation2 + $0x108] sm:$0xff]
    %v121 = vld [vmem:[#allocation2 + $0x110] sm:$0xff]
    %v122 = vld [vmem:[#allocation2 + $0x118] sm:$0xff]
    %v123 = vld [vmem:[#allocation2 + $0x120] sm:$0xff]
    %v124 = vld [vmem:[#allocation2 + $0x128] sm:$0xff]
    %v125 = vld [vmem:[#allocation2 + $0x130] sm:$0xff]
    %v126 = vld [vmem:[#allocation2 + $0x138] sm:$0xff]
    %v127 = vld [vmem:[#allocation2 + $0x140] sm:$0xff]
    %v128 = vld [vmem:[#allocation2 + $0x148] sm:$0xff]
    %v129 = vld [vmem:[#allocation2 + $0x150] sm:$0xff]
    %v130 = vld [vmem:[#allocation2 + $0x158] sm:$0xff]
    %v131 = vld [vmem:[#allocation2 + $0x160] sm:$0xff]
    %v132 = vld [vmem:[#allocation2 + $0x168] sm:$0xff]
    %v133 = vld [vmem:[#allocation2 + $0x170] sm:$0xff]
    %v134 = vld [vmem:[#allocation2 + $0x178] sm:$0xff]
    %v135 = vld [vmem:[#allocation2 + $0x180] sm:$0xff]
    %v136 = vld [vmem:[#allocation2 + $0x188] sm:$0xff]
    %v137 = vld [vmem:[#allocation2 + $0x190] sm:$0xff]
    %v138 = vld [vmem:[#allocation2 + $0x198] sm:$0xff]
    %v139 = vld [vmem:[#allocation2 + $0x1a0] sm:$0xff]
    %v140 = vld [vmem:[#allocation2 + $0x1a8] sm:$0xff]
    %v141 = vld [vmem:[#allocation2 + $0x1b0] sm:$0xff]
    %v142 = vld [vmem:[#allocation2 + $0x1b8] sm:$0xff]
    %v143 = vld [vmem:[#allocation2 + $0x1c0] sm:$0xff]
    %v144 = vld [vmem:[#allocation2 + $0x1c8] sm:$0xff]
    %v145 = vld [vmem:[#allocation2 + $0x1d0] sm:$0xff]
    %v146 = vld [vmem:[#allocation2 + $0x1d8] sm:$0xff]
    %v147 = vld [vmem:[#allocation2 + $0x1e0] sm:$0xff]
    %v148 = vld [vmem:[#allocation2 + $0x1e8] sm:$0xff]
    %v149 = vld [vmem:[#allocation2 + $0x1f0] sm:$0xff]
    %v150 = vld [vmem:[#allocation2 + $0x1f8] sm:$0xff]
    %v151 = vld [vmem:[%s0] sm:$0xf]
    %v152 = vld [vmem:[%s0 + $0x4] sm:$0xf]
    %v153 = vld [vmem:[%s0 + $0x8] sm:$0xf]
    %v154 = vld [vmem:[%s0 + $0xc] sm:$0xf]
    %v155 = vld [vmem:[%s0 + $0x10] sm:$0xf]
    %v156 = vld [vmem:[%s0 + $0x14] sm:$0xf]
    %v157 = vld [vmem:[%s0 + $0x18] sm:$0xf]
    %v158 = vld [vmem:[%s0 + $0x1c] sm:$0xf]
    %v159 = vld [vmem:[%s0 + $0x20] sm:$0xf]
    %v160 = vld [vmem:[%s0 + $0x24] sm:$0xf]
    %v161 = vld [vmem:[%s0 + $0x28] sm:$0xf]
    %v162 = vld [vmem:[%s0 + $0x2c] sm:$0xf]
    %v163 = vld [vmem:[%s0 + $0x30] sm:$0xf]
    %v164 = vld [vmem:[%s0 + $0x34] sm:$0xf]
    %v165 = vld [vmem:[%s0 + $0x38] sm:$0xf]
    %v166 = vld [vmem:[%s0 + $0x3c] sm:$0xf]
    %v167 = vld [vmem:[%s0 + $0x40] sm:$0xf]
    %v168 = vld [vmem:[%s0 + $0x44] sm:$0xf]
    %v169 = vld [vmem:[%s0 + $0x48] sm:$0xf]
    %v170 = vld [vmem:[%s0 + $0x4c] sm:$0xf]
    %v171 = vld [vmem:[%s0 + $0x50] sm:$0xf]
    %v172 = vld [vmem:[%s0 + $0x54] sm:$0xf]
    %v173 = vld [vmem:[%s0 + $0x58] sm:$0xf]
    %v174 = vld [vmem:[%s0 + $0x5c] sm:$0xf]
    %v175 = vld [vmem:[%s0 + $0x60] sm:$0xf]
    %v176 = vld [vmem:[%s0 + $0x64] sm:$0xf]
    %v177 = vld [vmem:[%s0 + $0x68] sm:$0xf]
    %v178 = vld [vmem:[%s0 + $0x6c] sm:$0xf]
    %v179 = vld [vmem:[%s0 + $0x70] sm:$0xf]
    %v180 = vld [vmem:[%s0 + $0x74] sm:$0xf]
    %v181 = vld [vmem:[%s0 + $0x78] sm:$0xf]
    %v182 = vld [vmem:[%s0 + $0x7c] sm:$0xf]
    %v183 = vld [vmem:[%s0 + $0x80] sm:$0xf]
    %v184 = vld [vmem:[%s0 + $0x84] sm:$0xf]
    %v185 = vld [vmem:[%s0 + $0x88] sm:$0xf]
    %v186 = vld [vmem:[%s0 + $0x8c] sm:$0xf]
    %v187 = vld [vmem:[%s0 + $0x90] sm:$0xf]
    %v188 = vld [vmem:[%s0 + $0x94] sm:$0xf]
    %v189 = vld [vmem:[%s0 + $0x98] sm:$0xf]
    %v190 = vld [vmem:[%s0 + $0x9c] sm:$0xf]
    %v191 = vld [vmem:[%s0 + $0xa0] sm:$0xf]
    %v192 = vld [vmem:[%s0 + $0xa4] sm:$0xf]
    %v193 = vld [vmem:[%s0 + $0xa8] sm:$0xf]
    %v194 = vld [vmem:[%s0 + $0xac] sm:$0xf]
    %v195 = vld [vmem:[%s0 + $0xb0] sm:$0xf]
    %v196 = vld [vmem:[%s0 + $0xb4] sm:$0xf]
    %v197 = vld [vmem:[%s0 + $0xb8] sm:$0xf]
    %v198 = vld [vmem:[%s0 + $0xbc] sm:$0xf]
    %v199 = vld [vmem:[%s0 + $0xc0] sm:$0xf]
    %v200 = vld [vmem:[%s0 + $0xc4] sm:$0xf]
    %v201 = vld [vmem:[%s0 + $0xc8] sm:$0xf]
    %v202 = vld [vmem:[%s0 + $0xcc] sm:$0xf]
    %v203 = vld [vmem:[%s0 + $0xd0] sm:$0xf]
    %v204 = vld [vmem:[%s0 + $0xd4] sm:$0xf]
    %v205 = vld [vmem:[%s0 + $0xd8] sm:$0xf]
    %v206 = vld [vmem:[%s0 + $0xdc] sm:$0xf]
    %v207 = vld [vmem:[%s0 + $0xe0] sm:$0xf]
    %v208 = vld [vmem:[%s0 + $0xe4] sm:$0xf]
    %v209 = vld [vmem:[%s0 + $0xe8] sm:$0xf]
    %v210 = vld [vmem:[%s0 + $0xec] sm:$0xf]
    %v211 = vld [vmem:[%s0 + $0xf0] sm:$0xf]
    %v212 = vld [vmem:[%s0 + $0xf4] sm:$0xf]
    %v213 = vld [vmem:[%s0 + $0xf8] sm:$0xf]
    %v214 = vld [vmem:[%s0 + $0xfc] sm:$0xf]
    %v215 = vld [vmem:[%s2] sm:$0xf]
    %v216 = vld [vmem:[%s2 + $0x4] sm:$0xf]
    %v217 = vld [vmem:[%s2 + $0x8] sm:$0xf]
    %v218 = vld [vmem:[%s2 + $0xc] sm:$0xf]
    %v219 = vld [vmem:[%s2 + $0x10] sm:$0x3]
    %v284 = vunpack.c.l.b16 %v151
    %v285 = vunpack.c.l.b16 %v152
    %v286 = vunpack.c.l.b16 %v153
    %v287 = vunpack.c.l.b16 %v154
    %v288 = vunpack.c.l.b16 %v155
    %v289 = vunpack.c.l.b16 %v156
    %v290 = vunpack.c.l.b16 %v157
    %v291 = vunpack.c.l.b16 %v158
    %v292 = vunpack.c.l.b16 %v159
    %v293 = vunpack.c.l.b16 %v160
    %v294 = vunpack.c.l.b16 %v161
    %v295 = vunpack.c.l.b16 %v162
    %v296 = vunpack.c.l.b16 %v163
    %v297 = vunpack.c.l.b16 %v164
    %v298 = vunpack.c.l.b16 %v165
    %v299 = vunpack.c.l.b16 %v166
    %v300 = vunpack.c.l.b16 %v167
    %v301 = vunpack.c.l.b16 %v168
    %v302 = vunpack.c.l.b16 %v169
    %v303 = vunpack.c.l.b16 %v170
    %v304 = vunpack.c.l.b16 %v171
    %v305 = vunpack.c.l.b16 %v172
    %v306 = vunpack.c.l.b16 %v173
    %v307 = vunpack.c.l.b16 %v174
    %v308 = vunpack.c.l.b16 %v175
    %v309 = vunpack.c.l.b16 %v176
    %v310 = vunpack.c.l.b16 %v177
    %v311 = vunpack.c.l.b16 %v178
    %v312 = vunpack.c.l.b16 %v179
    %v313 = vunpack.c.l.b16 %v180
    %v314 = vunpack.c.l.b16 %v181
    %v315 = vunpack.c.l.b16 %v182
    %v316 = vunpack.c.l.b16 %v183
    %v317 = vunpack.c.l.b16 %v184
    %v318 = vunpack.c.l.b16 %v185
    %v319 = vunpack.c.l.b16 %v186
    %v320 = vunpack.c.l.b16 %v187
    %v321 = vunpack.c.l.b16 %v188
    %v322 = vunpack.c.l.b16 %v189
    %v323 = vunpack.c.l.b16 %v190
    %v324 = vunpack.c.l.b16 %v191
    %v325 = vunpack.c.l.b16 %v192
    %v326 = vunpack.c.l.b16 %v193
    %v327 = vunpack.c.l.b16 %v194
    %v328 = vunpack.c.l.b16 %v195
    %v329 = vunpack.c.l.b16 %v196
    %v330 = vunpack.c.l.b16 %v197
    %v331 = vunpack.c.l.b16 %v198
    %v332 = vunpack.c.l.b16 %v199
    %v333 = vunpack.c.l.b16 %v200
    %v334 = vunpack.c.l.b16 %v201
    %v335 = vunpack.c.l.b16 %v202
    %v336 = vunpack.c.l.b16 %v203
    %v337 = vunpack.c.l.b16 %v204
    %v338 = vunpack.c.l.b16 %v205
    %v339 = vunpack.c.l.b16 %v206
    %v340 = vunpack.c.l.b16 %v207
    %v341 = vunpack.c.l.b16 %v208
    %v342 = vunpack.c.l.b16 %v209
    %v343 = vunpack.c.l.b16 %v210
    %v344 = vunpack.c.l.b16 %v211
    %v345 = vunpack.c.l.b16 %v212
    %v346 = vunpack.c.l.b16 %v213
    %v347 = vunpack.c.l.b16 %v214
    %v348 = vpack.c.b16 %v285, %v284
    %v349 = vpack.c.b16 %v287, %v286
    %v350 = vpack.c.b16 %v289, %v288
    %v351 = vpack.c.b16 %v291, %v290
    %v352 = vpack.c.b16 %v293, %v292
    %v353 = vpack.c.b16 %v295, %v294
    %v354 = vpack.c.b16 %v297, %v296
    %v355 = vpack.c.b16 %v299, %v298
    %v356 = vpack.c.b16 %v301, %v300
    %v357 = vpack.c.b16 %v303, %v302
    %v358 = vpack.c.b16 %v305, %v304
    %v359 = vpack.c.b16 %v307, %v306
    %v360 = vpack.c.b16 %v309, %v308
    %v361 = vpack.c.b16 %v311, %v310
    %v362 = vpack.c.b16 %v313, %v312
    %v363 = vpack.c.b16 %v315, %v314
    %v364 = vpack.c.b16 %v317, %v316
    %v365 = vpack.c.b16 %v319, %v318
    %v366 = vpack.c.b16 %v321, %v320
    %v367 = vpack.c.b16 %v323, %v322
    %v368 = vpack.c.b16 %v325, %v324
    %v369 = vpack.c.b16 %v327, %v326
    %v370 = vpack.c.b16 %v329, %v328
    %v371 = vpack.c.b16 %v331, %v330
    %v372 = vpack.c.b16 %v333, %v332
    %v373 = vpack.c.b16 %v335, %v334
    %v374 = vpack.c.b16 %v337, %v336
    %v375 = vpack.c.b16 %v339, %v338
    %v376 = vpack.c.b16 %v341, %v340
    %v377 = vpack.c.b16 %v343, %v342
    %v378 = vpack.c.b16 %v345, %v344
    %v379 = vpack.c.b16 %v347, %v346
    %v385 = vunpack.c.l.b16 %v215
    %v386 = vunpack.c.l.b16 %v216
    %v387 = vunpack.c.l.b16 %v217
    %v388 = vunpack.c.l.b16 %v218
    %v389 = vunpack.c.l.b16 %v219
    %v390 = vpack.c.b16 %v386, %v385
    %v391 = vpack.c.b16 %v388, %v387
    %v392 = vpack.c.b16 %v389, %v389
    %vm395 = vcmask 293888
    %v397 = vsel %vm395, %v348, 0
    %v400 = vsel %vm395, %v349, 0
    %v403 = vsel %vm395, %v350, 0
    %v406 = vsel %vm395, %v351, 0
    %v409 = vsel %vm395, %v352, 0
    %v412 = vsel %vm395, %v353, 0
    %v415 = vsel %vm395, %v354, 0
    %v418 = vsel %vm395, %v355, 0
    %v421 = vsel %vm395, %v356, 0
    %v424 = vsel %vm395, %v357, 0
    %v427 = vsel %vm395, %v358, 0
    %v430 = vsel %vm395, %v359, 0
    %v433 = vsel %vm395, %v360, 0
    %v436 = vsel %vm395, %v361, 0
    %v439 = vsel %vm395, %v362, 0
    %v442 = vsel %vm395, %v363, 0
    %v445 = vsel %vm395, %v364, 0
    %v448 = vsel %vm395, %v365, 0
    %v451 = vsel %vm395, %v366, 0
    %v454 = vsel %vm395, %v367, 0
    %v457 = vsel %vm395, %v368, 0
    %v460 = vsel %vm395, %v369, 0
    %v463 = vsel %vm395, %v370, 0
    %v466 = vsel %vm395, %v371, 0
    %v469 = vsel %vm395, %v372, 0
    %v472 = vsel %vm395, %v373, 0
    %v475 = vsel %vm395, %v374, 0
    %v478 = vsel %vm395, %v375, 0
    %v481 = vsel %vm395, %v376, 0
    %v484 = vsel %vm395, %v377, 0
    %v487 = vsel %vm395, %v378, 0
    %v490 = vsel %vm395, %v379, 0
    %vm492 = vcmask 1041408
    %v494 = vsel %vm492, %v392, 0
    %496 = vmatprep.subr.bf16.mxu0 0
    %497 = vmatpush1.bf16.msra.mxu0 0
    %498 = vmatprep.subr.bf16.mxu0 0
    %499 = vmatpush1.bf16.msra.mxu0 0
    %500 = vmatprep.subr.bf16.mxu0 0
    %501 = vmatpush1.bf16.msra.mxu0 0
    %502 = vmatprep.subr.bf16.mxu0 0
    %503 = vmatpush1.bf16.msra.mxu0 0
    %504 = vmatprep.subr.bf16.mxu0 0
    %505 = vmatpush1.bf16.msra.mxu0 0
    %506 = vmatprep.subr.bf16.mxu0 0
    %507 = vmatpush1.bf16.msra.mxu0 %v494
    %508 = vmatprep.subr.bf16.mxu0 0
    %509 = vmatpush1.bf16.msra.mxu0 %v391
    %510 = vmatprep.subr.bf16.mxu0 0
    %511 = vmatpush1.bf16.msra.mxu0 %v390
    %512 = vmatprep.subr.bf16.mxu0 0
    %513 = vmatpush2.bf16.msra.mxu0 0
    %514 = vmatprep.subr.bf16.mxu0 0
    %515 = vmatpush2.bf16.msra.mxu0 0
    %516 = vmatprep.subr.bf16.mxu0 0
    %517 = vmatpush2.bf16.msra.mxu0 0
    %518 = vmatprep.subr.bf16.mxu0 0
    %519 = vmatpush2.bf16.msra.mxu0 0
    %520 = vmatprep.subr.bf16.mxu0 0
    %521 = vmatpush2.bf16.msra.mxu0 0
    %522 = vmatprep.subr.bf16.mxu0 0
    %523 = vmatpush2.bf16.msra.mxu0 0
    %524 = vmatprep.subr.bf16.mxu0 0
    %525 = vmatpush2.bf16.msra.mxu0 0
    %526 = vmatprep.subr.bf16.mxu0 0
    %527 = vmatpush2.bf16.msra.mxu0 0
    %528 = vmatprep.mubr.bf16.mxu0 0
    %529 = vmatmul.mubr.bf16.gmra.mxu0 %v397
    %v530 = vpop.f32.mrf.mxu0
    %v531 = vadd.f32 0.0, %v530
    %v532 = vpop.f32.mrf.mxu0
    %v533 = vpop.f32.mrf.mxu0
    %v534 = vadd.f32 0.0, %v533
    %v535 = vpop.f32.mrf.mxu0
    %536 = vmatprep.mubr.bf16.mxu0 0
    %537 = vmatmul.mubr.bf16.gmra.mxu0 %v400
    %v538 = vpop.f32.mrf.mxu0
    %v539 = vadd.f32 0.0, %v538
    %v540 = vpop.f32.mrf.mxu0
    %v541 = vpop.f32.mrf.mxu0
    %v542 = vadd.f32 0.0, %v541
    %v543 = vpop.f32.mrf.mxu0
    %544 = vmatprep.mubr.bf16.mxu0 0
    %545 = vmatmul.mubr.bf16.gmra.mxu0 %v403
    %v546 = vpop.f32.mrf.mxu0
    %v547 = vadd.f32 0.0, %v546
    %v548 = vpop.f32.mrf.mxu0
    %v549 = vpop.f32.mrf.mxu0
    %v550 = vadd.f32 0.0, %v549
    %v551 = vpop.f32.mrf.mxu0
    %552 = vmatprep.mubr.bf16.mxu0 0
    %553 = vmatmul.mubr.bf16.gmra.mxu0 %v406
    %v554 = vpop.f32.mrf.mxu0
    %v555 = vadd.f32 0.0, %v554
    %v556 = vpop.f32.mrf.mxu0
    %v557 = vpop.f32.mrf.mxu0
    %v558 = vadd.f32 0.0, %v557
    %v559 = vpop.f32.mrf.mxu0
    %560 = vmatprep.mubr.bf16.mxu0 0
    %561 = vmatmul.mubr.bf16.gmra.mxu0 %v409
    %v562 = vpop.f32.mrf.mxu0
    %v563 = vadd.f32 0.0, %v562
    %v564 = vpop.f32.mrf.mxu0
    %v565 = vpop.f32.mrf.mxu0
    %v566 = vadd.f32 0.0, %v565
    %v567 = vpop.f32.mrf.mxu0
    %568 = vmatprep.mubr.bf16.mxu0 0
    %569 = vmatmul.mubr.bf16.gmra.mxu0 %v412
    %v570 = vpop.f32.mrf.mxu0
    %v571 = vadd.f32 0.0, %v570
    %v572 = vpop.f32.mrf.mxu0
    %v573 = vpop.f32.mrf.mxu0
    %v574 = vadd.f32 0.0, %v573
    %v575 = vpop.f32.mrf.mxu0
    %576 = vmatprep.mubr.bf16.mxu0 0
    %577 = vmatmul.mubr.bf16.gmra.mxu0 %v415
    %v578 = vpop.f32.mrf.mxu0
    %v579 = vadd.f32 0.0, %v578
    %v580 = vpop.f32.mrf.mxu0
    %v581 = vpop.f32.mrf.mxu0
    %v582 = vadd.f32 0.0, %v581
    %v583 = vpop.f32.mrf.mxu0
    %584 = vmatprep.mubr.bf16.mxu0 0
    %585 = vmatmul.mubr.bf16.gmra.mxu0 %v418
    %v586 = vpop.f32.mrf.mxu0
    %v587 = vadd.f32 0.0, %v586
    %v588 = vpop.f32.mrf.mxu0
    %v589 = vpop.f32.mrf.mxu0
    %v590 = vadd.f32 0.0, %v589
    %v591 = vpop.f32.mrf.mxu0
    %592 = vmatprep.mubr.bf16.mxu0 0
    %593 = vmatmul.mubr.bf16.gmra.mxu0 %v421
    %v594 = vpop.f32.mrf.mxu0
    %v595 = vadd.f32 0.0, %v594
    %v596 = vpop.f32.mrf.mxu0
    %v597 = vpop.f32.mrf.mxu0
    %v598 = vadd.f32 0.0, %v597
    %v599 = vpop.f32.mrf.mxu0
    %600 = vmatprep.mubr.bf16.mxu0 0
    %601 = vmatmul.mubr.bf16.gmra.mxu0 %v424
    %v602 = vpop.f32.mrf.mxu0
    %v603 = vadd.f32 0.0, %v602
    %v604 = vpop.f32.mrf.mxu0
    %v605 = vpop.f32.mrf.mxu0
    %v606 = vadd.f32 0.0, %v605
    %v607 = vpop.f32.mrf.mxu0
    %608 = vmatprep.mubr.bf16.mxu0 0
    %609 = vmatmul.mubr.bf16.gmra.mxu0 %v427
    %v610 = vpop.f32.mrf.mxu0
    %v611 = vadd.f32 0.0, %v610
    %v612 = vpop.f32.mrf.mxu0
    %v613 = vpop.f32.mrf.mxu0
    %v614 = vadd.f32 0.0, %v613
    %v615 = vpop.f32.mrf.mxu0
    %616 = vmatprep.mubr.bf16.mxu0 0
    %617 = vmatmul.mubr.bf16.gmra.mxu0 %v430
    %v618 = vpop.f32.mrf.mxu0
    %v619 = vadd.f32 0.0, %v618
    %v620 = vpop.f32.mrf.mxu0
    %v621 = vpop.f32.mrf.mxu0
    %v622 = vadd.f32 0.0, %v621
    %v623 = vpop.f32.mrf.mxu0
    %624 = vmatprep.mubr.bf16.mxu0 0
    %625 = vmatmul.mubr.bf16.gmra.mxu0 %v433
    %v626 = vpop.f32.mrf.mxu0
    %v627 = vadd.f32 0.0, %v626
    %v628 = vpop.f32.mrf.mxu0
    %v629 = vpop.f32.mrf.mxu0
    %v630 = vadd.f32 0.0, %v629
    %v631 = vpop.f32.mrf.mxu0
    %632 = vmatprep.mubr.bf16.mxu0 0
    %633 = vmatmul.mubr.bf16.gmra.mxu0 %v436
    %v634 = vpop.f32.mrf.mxu0
    %v635 = vadd.f32 0.0, %v634
    %v636 = vpop.f32.mrf.mxu0
    %v637 = vpop.f32.mrf.mxu0
    %v638 = vadd.f32 0.0, %v637
    %v639 = vpop.f32.mrf.mxu0
    %640 = vmatprep.mubr.bf16.mxu0 0
    %641 = vmatmul.mubr.bf16.gmra.mxu0 %v439
    %v642 = vpop.f32.mrf.mxu0
    %v643 = vadd.f32 0.0, %v642
    %v644 = vpop.f32.mrf.mxu0
    %v645 = vpop.f32.mrf.mxu0
    %v646 = vadd.f32 0.0, %v645
    %v647 = vpop.f32.mrf.mxu0
    %648 = vmatprep.mubr.bf16.mxu0 0
    %649 = vmatmul.mubr.bf16.gmra.mxu0 %v442
    %v650 = vpop.f32.mrf.mxu0
    %v651 = vadd.f32 0.0, %v650
    %v652 = vpop.f32.mrf.mxu0
    %v653 = vpop.f32.mrf.mxu0
    %v654 = vadd.f32 0.0, %v653
    %v655 = vpop.f32.mrf.mxu0
    %656 = vmatprep.mubr.bf16.mxu0 0
    %657 = vmatmul.mubr.bf16.gmra.mxu0 %v445
    %v658 = vpop.f32.mrf.mxu0
    %v659 = vadd.f32 0.0, %v658
    %v660 = vpop.f32.mrf.mxu0
    %v661 = vpop.f32.mrf.mxu0
    %v662 = vadd.f32 0.0, %v661
    %v663 = vpop.f32.mrf.mxu0
    %664 = vmatprep.mubr.bf16.mxu0 0
    %665 = vmatmul.mubr.bf16.gmra.mxu0 %v448
    %v666 = vpop.f32.mrf.mxu0
    %v667 = vadd.f32 0.0, %v666
    %v668 = vpop.f32.mrf.mxu0
    %v669 = vpop.f32.mrf.mxu0
    %v670 = vadd.f32 0.0, %v669
    %v671 = vpop.f32.mrf.mxu0
    %672 = vmatprep.mubr.bf16.mxu0 0
    %673 = vmatmul.mubr.bf16.gmra.mxu0 %v451
    %v674 = vpop.f32.mrf.mxu0
    %v675 = vadd.f32 0.0, %v674
    %v676 = vpop.f32.mrf.mxu0
    %v677 = vpop.f32.mrf.mxu0
    %v678 = vadd.f32 0.0, %v677
    %v679 = vpop.f32.mrf.mxu0
    %680 = vmatprep.mubr.bf16.mxu0 0
    %681 = vmatmul.mubr.bf16.gmra.mxu0 %v454
    %v682 = vpop.f32.mrf.mxu0
    %v683 = vadd.f32 0.0, %v682
    %v684 = vpop.f32.mrf.mxu0
    %v685 = vpop.f32.mrf.mxu0
    %v686 = vadd.f32 0.0, %v685
    %v687 = vpop.f32.mrf.mxu0
    %688 = vmatprep.mubr.bf16.mxu0 0
    %689 = vmatmul.mubr.bf16.gmra.mxu0 %v457
    %v690 = vpop.f32.mrf.mxu0
    %v691 = vadd.f32 0.0, %v690
    %v692 = vpop.f32.mrf.mxu0
    %v693 = vpop.f32.mrf.mxu0
    %v694 = vadd.f32 0.0, %v693
    %v695 = vpop.f32.mrf.mxu0
    %696 = vmatprep.mubr.bf16.mxu0 0
    %697 = vmatmul.mubr.bf16.gmra.mxu0 %v460
    %v698 = vpop.f32.mrf.mxu0
    %v699 = vadd.f32 0.0, %v698
    %v700 = vpop.f32.mrf.mxu0
    %v701 = vpop.f32.mrf.mxu0
    %v702 = vadd.f32 0.0, %v701
    %v703 = vpop.f32.mrf.mxu0
    %704 = vmatprep.mubr.bf16.mxu0 0
    %705 = vmatmul.mubr.bf16.gmra.mxu0 %v463
    %v706 = vpop.f32.mrf.mxu0
    %v707 = vadd.f32 0.0, %v706
    %v708 = vpop.f32.mrf.mxu0
    %v709 = vpop.f32.mrf.mxu0
    %v710 = vadd.f32 0.0, %v709
    %v711 = vpop.f32.mrf.mxu0
    %712 = vmatprep.mubr.bf16.mxu0 0
    %713 = vmatmul.mubr.bf16.gmra.mxu0 %v466
    %v714 = vpop.f32.mrf.mxu0
    %v715 = vadd.f32 0.0, %v714
    %v716 = vpop.f32.mrf.mxu0
    %v717 = vpop.f32.mrf.mxu0
    %v718 = vadd.f32 0.0, %v717
    %v719 = vpop.f32.mrf.mxu0
    %720 = vmatprep.mubr.bf16.mxu0 0
    %721 = vmatmul.mubr.bf16.gmra.mxu0 %v469
    %v722 = vpop.f32.mrf.mxu0
    %v723 = vadd.f32 0.0, %v722
    %v724 = vpop.f32.mrf.mxu0
    %v725 = vpop.f32.mrf.mxu0
    %v726 = vadd.f32 0.0, %v725
    %v727 = vpop.f32.mrf.mxu0
    %728 = vmatprep.mubr.bf16.mxu0 0
    %729 = vmatmul.mubr.bf16.gmra.mxu0 %v472
    %v730 = vpop.f32.mrf.mxu0
    %v731 = vadd.f32 0.0, %v730
    %v732 = vpop.f32.mrf.mxu0
    %v733 = vpop.f32.mrf.mxu0
    %v734 = vadd.f32 0.0, %v733
    %v735 = vpop.f32.mrf.mxu0
    %736 = vmatprep.mubr.bf16.mxu0 0
    %737 = vmatmul.mubr.bf16.gmra.mxu0 %v475
    %v738 = vpop.f32.mrf.mxu0
    %v739 = vadd.f32 0.0, %v738
    %v740 = vpop.f32.mrf.mxu0
    %v741 = vpop.f32.mrf.mxu0
    %v742 = vadd.f32 0.0, %v741
    %v743 = vpop.f32.mrf.mxu0
    %744 = vmatprep.mubr.bf16.mxu0 0
    %745 = vmatmul.mubr.bf16.gmra.mxu0 %v478
    %v746 = vpop.f32.mrf.mxu0
    %v747 = vadd.f32 0.0, %v746
    %v748 = vpop.f32.mrf.mxu0
    %v749 = vpop.f32.mrf.mxu0
    %v750 = vadd.f32 0.0, %v749
    %v751 = vpop.f32.mrf.mxu0
    %752 = vmatprep.mubr.bf16.mxu0 0
    %753 = vmatmul.mubr.bf16.gmra.mxu0 %v481
    %v754 = vpop.f32.mrf.mxu0
    %v755 = vadd.f32 0.0, %v754
    %v756 = vpop.f32.mrf.mxu0
    %v757 = vpop.f32.mrf.mxu0
    %v758 = vadd.f32 0.0, %v757
    %v759 = vpop.f32.mrf.mxu0
    %760 = vmatprep.mubr.bf16.mxu0 0
    %761 = vmatmul.mubr.bf16.gmra.mxu0 %v484
    %v762 = vpop.f32.mrf.mxu0
    %v763 = vadd.f32 0.0, %v762
    %v764 = vpop.f32.mrf.mxu0
    %v765 = vpop.f32.mrf.mxu0
    %v766 = vadd.f32 0.0, %v765
    %v767 = vpop.f32.mrf.mxu0
    %768 = vmatprep.mubr.bf16.mxu0 0
    %769 = vmatmul.mubr.bf16.gmra.mxu0 %v487
    %v770 = vpop.f32.mrf.mxu0
    %v771 = vadd.f32 0.0, %v770
    %v772 = vpop.f32.mrf.mxu0
    %v773 = vpop.f32.mrf.mxu0
    %v774 = vadd.f32 0.0, %v773
    %v775 = vpop.f32.mrf.mxu0
    %776 = vmatprep.mubr.bf16.mxu0 0
    %777 = vmatmul.mubr.bf16.gmra.mxu0 %v490
    %v778 = vpop.f32.mrf.mxu0
    %v779 = vadd.f32 0.0, %v778
    %v780 = vpop.f32.mrf.mxu0
    %v781 = vpop.f32.mrf.mxu0
    %v782 = vadd.f32 0.0, %v781
    %v783 = vpop.f32.mrf.mxu0
    %784 = vdwg.mxu0
    %v785 = vadd.f32 %v87, %v531
    %v786 = vadd.f32 %v88, %v534
    %v787 = vadd.f32 %v89, %v539
    %v788 = vadd.f32 %v90, %v542
    %v789 = vadd.f32 %v91, %v547
    %v790 = vadd.f32 %v92, %v550
    %v791 = vadd.f32 %v93, %v555
    %v792 = vadd.f32 %v94, %v558
    %v793 = vadd.f32 %v95, %v563
    %v794 = vadd.f32 %v96, %v566
    %v795 = vadd.f32 %v97, %v571
    %v796 = vadd.f32 %v98, %v574
    %v797 = vadd.f32 %v99, %v579
    %v798 = vadd.f32 %v100, %v582
    %v799 = vadd.f32 %v101, %v587
    %v800 = vadd.f32 %v102, %v590
    %v801 = vadd.f32 %v103, %v595
    %v802 = vadd.f32 %v104, %v598
    %v803 = vadd.f32 %v105, %v603
    %v804 = vadd.f32 %v106, %v606
    %v805 = vadd.f32 %v107, %v611
    %v806 = vadd.f32 %v108, %v614
    %v807 = vadd.f32 %v109, %v619
    %v808 = vadd.f32 %v110, %v622
    %v809 = vadd.f32 %v111, %v627
    %v810 = vadd.f32 %v112, %v630
    %v811 = vadd.f32 %v113, %v635
    %v812 = vadd.f32 %v114, %v638
    %v813 = vadd.f32 %v115, %v643
    %v814 = vadd.f32 %v116, %v646
    %v815 = vadd.f32 %v117, %v651
    %v816 = vadd.f32 %v118, %v654
    %v817 = vadd.f32 %v119, %v659
    %v818 = vadd.f32 %v120, %v662
    %v819 = vadd.f32 %v121, %v667
    %v820 = vadd.f32 %v122, %v670
    %v821 = vadd.f32 %v123, %v675
    %v822 = vadd.f32 %v124, %v678
    %v823 = vadd.f32 %v125, %v683
    %v824 = vadd.f32 %v126, %v686
    %v825 = vadd.f32 %v127, %v691
    %v826 = vadd.f32 %v128, %v694
    %v827 = vadd.f32 %v129, %v699
    %v828 = vadd.f32 %v130, %v702
    %v829 = vadd.f32 %v131, %v707
    %v830 = vadd.f32 %v132, %v710
    %v831 = vadd.f32 %v133, %v715
    %v832 = vadd.f32 %v134, %v718
    %v833 = vadd.f32 %v135, %v723
    %v834 = vadd.f32 %v136, %v726
    %v835 = vadd.f32 %v137, %v731
    %v836 = vadd.f32 %v138, %v734
    %v837 = vadd.f32 %v139, %v739
    %v838 = vadd.f32 %v140, %v742
    %v839 = vadd.f32 %v141, %v747
    %v840 = vadd.f32 %v142, %v750
    %v841 = vadd.f32 %v143, %v755
    %v842 = vadd.f32 %v144, %v758
    %v843 = vadd.f32 %v145, %v763
    %v844 = vadd.f32 %v146, %v766
    %v845 = vadd.f32 %v147, %v771
    %v846 = vadd.f32 %v148, %v774
    %v847 = vadd.f32 %v149, %v779
    %v848 = vadd.f32 %v150, %v782
    %849 = vst [vmem:[#allocation2] sm:$0xff] %v785
    %850 = vst [vmem:[#allocation2 + $0x8] sm:$0xff] %v786
    %851 = vst [vmem:[#allocation2 + $0x10] sm:$0xff] %v787
    %852 = vst [vmem:[#allocation2 + $0x18] sm:$0xff] %v788
    %853 = vst [vmem:[#allocation2 + $0x20] sm:$0xff] %v789
    %854 = vst [vmem:[#allocation2 + $0x28] sm:$0xff] %v790
    %855 = vst [vmem:[#allocation2 + $0x30] sm:$0xff] %v791
    %856 = vst [vmem:[#allocation2 + $0x38] sm:$0xff] %v792
    %857 = vst [vmem:[#allocation2 + $0x40] sm:$0xff] %v793
    %858 = vst [vmem:[#allocation2 + $0x48] sm:$0xff] %v794
    %859 = vst [vmem:[#allocation2 + $0x50] sm:$0xff] %v795
    %860 = vst [vmem:[#allocation2 + $0x58] sm:$0xff] %v796
    %861 = vst [vmem:[#allocation2 + $0x60] sm:$0xff] %v797
    %862 = vst [vmem:[#allocation2 + $0x68] sm:$0xff] %v798
    %863 = vst [vmem:[#allocation2 + $0x70] sm:$0xff] %v799
    %864 = vst [vmem:[#allocation2 + $0x78] sm:$0xff] %v800
    %865 = vst [vmem:[#allocation2 + $0x80] sm:$0xff] %v801
    %866 = vst [vmem:[#allocation2 + $0x88] sm:$0xff] %v802
    %867 = vst [vmem:[#allocation2 + $0x90] sm:$0xff] %v803
    %868 = vst [vmem:[#allocation2 + $0x98] sm:$0xff] %v804
    %869 = vst [vmem:[#allocation2 + $0xa0] sm:$0xff] %v805
    %870 = vst [vmem:[#allocation2 + $0xa8] sm:$0xff] %v806
    %871 = vst [vmem:[#allocation2 + $0xb0] sm:$0xff] %v807
    %872 = vst [vmem:[#allocation2 + $0xb8] sm:$0xff] %v808
    %873 = vst [vmem:[#allocation2 + $0xc0] sm:$0xff] %v809
    %874 = vst [vmem:[#allocation2 + $0xc8] sm:$0xff] %v810
    %875 = vst [vmem:[#allocation2 + $0xd0] sm:$0xff] %v811
    %876 = vst [vmem:[#allocation2 + $0xd8] sm:$0xff] %v812
    %877 = vst [vmem:[#allocation2 + $0xe0] sm:$0xff] %v813
    %878 = vst [vmem:[#allocation2 + $0xe8] sm:$0xff] %v814
    %879 = vst [vmem:[#allocation2 + $0xf0] sm:$0xff] %v815
    %880 = vst [vmem:[#allocation2 + $0xf8] sm:$0xff] %v816
    %881 = vst [vmem:[#allocation2 + $0x100] sm:$0xff] %v817
    %882 = vst [vmem:[#allocation2 + $0x108] sm:$0xff] %v818
    %883 = vst [vmem:[#allocation2 + $0x110] sm:$0xff] %v819
    %884 = vst [vmem:[#allocation2 + $0x118] sm:$0xff] %v820
    %885 = vst [vmem:[#allocation2 + $0x120] sm:$0xff] %v821
    %886 = vst [vmem:[#allocation2 + $0x128] sm:$0xff] %v822
    %887 = vst [vmem:[#allocation2 + $0x130] sm:$0xff] %v823
    %888 = vst [vmem:[#allocation2 + $0x138] sm:$0xff] %v824
    %889 = vst [vmem:[#allocation2 + $0x140] sm:$0xff] %v825
    %890 = vst [vmem:[#allocation2 + $0x148] sm:$0xff] %v826
    %891 = vst [vmem:[#allocation2 + $0x150] sm:$0xff] %v827
    %892 = vst [vmem:[#allocation2 + $0x158] sm:$0xff] %v828
    %893 = vst [vmem:[#allocation2 + $0x160] sm:$0xff] %v829
    %894 = vst [vmem:[#allocation2 + $0x168] sm:$0xff] %v830
    %895 = vst [vmem:[#allocation2 + $0x170] sm:$0xff] %v831
    %896 = vst [vmem:[#allocation2 + $0x178] sm:$0xff] %v832
    %897 = vst [vmem:[#allocation2 + $0x180] sm:$0xff] %v833
    %898 = vst [vmem:[#allocation2 + $0x188] sm:$0xff] %v834
    %899 = vst [vmem:[#allocation2 + $0x190] sm:$0xff] %v835
    %900 = vst [vmem:[#allocation2 + $0x198] sm:$0xff] %v836
    %901 = vst [vmem:[#allocation2 + $0x1a0] sm:$0xff] %v837
    %902 = vst [vmem:[#allocation2 + $0x1a8] sm:$0xff] %v838
    %903 = vst [vmem:[#allocation2 + $0x1b0] sm:$0xff] %v839
    %904 = vst [vmem:[#allocation2 + $0x1b8] sm:$0xff] %v840
    %905 = vst [vmem:[#allocation2 + $0x1c0] sm:$0xff] %v841
    %906 = vst [vmem:[#allocation2 + $0x1c8] sm:$0xff] %v842
    %907 = vst [vmem:[#allocation2 + $0x1d0] sm:$0xff] %v843
    %908 = vst [vmem:[#allocation2 + $0x1d8] sm:$0xff] %v844
    %909 = vst [vmem:[#allocation2 + $0x1e0] sm:$0xff] %v845
    %910 = vst [vmem:[#allocation2 + $0x1e8] sm:$0xff] %v846
    %911 = vst [vmem:[#allocation2 + $0x1f0] sm:$0xff] %v847
    %912 = vst [vmem:[#allocation2 + $0x1f8] sm:$0xff] %v848
    // Predicated region
    $region22: #{tpu_custom_call.1} parent=1 // pred_check
      %p913 = pneg %p19
    $region23: #{tpu_custom_call.1} parent=1 // pred_check_branch
      %915 = sbr.rel (%p913) target = $region25
    $region24: #{tpu_custom_call.1} parent=1 // pred_region
      %v916 = vld [vmem:[#allocation2] sm:$0xff]
      %v917 = vld [vmem:[#allocation2 + $0x8] sm:$0xff]
      %v918 = vld [vmem:[#allocation2 + $0x10] sm:$0xff]
      %v919 = vld [vmem:[#allocation2 + $0x18] sm:$0xff]
      %v920 = vld [vmem:[#allocation2 + $0x20] sm:$0xff]
      %v921 = vld [vmem:[#allocation2 + $0x28] sm:$0xff]
      %v922 = vld [vmem:[#allocation2 + $0x30] sm:$0xff]
      %v923 = vld [vmem:[#allocation2 + $0x38] sm:$0xff]
      %v924 = vld [vmem:[#allocation2 + $0x40] sm:$0xff]
      %v925 = vld [vmem:[#allocation2 + $0x48] sm:$0xff]
      %v926 = vld [vmem:[#allocation2 + $0x50] sm:$0xff]
      %v927 = vld [vmem:[#allocation2 + $0x58] sm:$0xff]
      %v928 = vld [vmem:[#allocation2 + $0x60] sm:$0xff]
      %v929 = vld [vmem:[#allocation2 + $0x68] sm:$0xff]
      %v930 = vld [vmem:[#allocation2 + $0x70] sm:$0xff]
      %v931 = vld [vmem:[#allocation2 + $0x78] sm:$0xff]
      %v932 = vld [vmem:[#allocation2 + $0x80] sm:$0xff]
      %v933 = vld [vmem:[#allocation2 + $0x88] sm:$0xff]
      %v934 = vld [vmem:[#allocation2 + $0x90] sm:$0xff]
      %v935 = vld [vmem:[#allocation2 + $0x98] sm:$0xff]
      %v936 = vld [vmem:[#allocation2 + $0xa0] sm:$0xff]
      %v937 = vld [vmem:[#allocation2 + $0xa8] sm:$0xff]
      %v938 = vld [vmem:[#allocation2 + $0xb0] sm:$0xff]
      %v939 = vld [vmem:[#allocation2 + $0xb8] sm:$0xff]
      %v940 = vld [vmem:[#allocation2 + $0xc0] sm:$0xff]
      %v941 = vld [vmem:[#allocation2 + $0xc8] sm:$0xff]
      %v942 = vld [vmem:[#allocation2 + $0xd0] sm:$0xff]
      %v943 = vld [vmem:[#allocation2 + $0xd8] sm:$0xff]
      %v944 = vld [vmem:[#allocation2 + $0xe0] sm:$0xff]
      %v945 = vld [vmem:[#allocation2 + $0xe8] sm:$0xff]
      %v946 = vld [vmem:[#allocation2 + $0xf0] sm:$0xff]
      %v947 = vld [vmem:[#allocation2 + $0xf8] sm:$0xff]
      %v948 = vld [vmem:[#allocation2 + $0x100] sm:$0xff]
      %v949 = vld [vmem:[#allocation2 + $0x108] sm:$0xff]
      %v950 = vld [vmem:[#allocation2 + $0x110] sm:$0xff]
      %v951 = vld [vmem:[#allocation2 + $0x118] sm:$0xff]
      %v952 = vld [vmem:[#allocation2 + $0x120] sm:$0xff]
      %v953 = vld [vmem:[#allocation2 + $0x128] sm:$0xff]
      %v954 = vld [vmem:[#allocation2 + $0x130] sm:$0xff]
      %v955 = vld [vmem:[#allocation2 + $0x138] sm:$0xff]
      %v956 = vld [vmem:[#allocation2 + $0x140] sm:$0xff]
      %v957 = vld [vmem:[#allocation2 + $0x148] sm:$0xff]
      %v958 = vld [vmem:[#allocation2 + $0x150] sm:$0xff]
      %v959 = vld [vmem:[#allocation2 + $0x158] sm:$0xff]
      %v960 = vld [vmem:[#allocation2 + $0x160] sm:$0xff]
      %v961 = vld [vmem:[#allocation2 + $0x168] sm:$0xff]
      %v962 = vld [vmem:[#allocation2 + $0x170] sm:$0xff]
      %v963 = vld [vmem:[#allocation2 + $0x178] sm:$0xff]
      %v964 = vld [vmem:[#allocation2 + $0x180] sm:$0xff]
      %v965 = vld [vmem:[#allocation2 + $0x188] sm:$0xff]
      %v966 = vld [vmem:[#allocation2 + $0x190] sm:$0xff]
      %v967 = vld [vmem:[#allocation2 + $0x198] sm:$0xff]
      %v968 = vld [vmem:[#allocation2 + $0x1a0] sm:$0xff]
      %v969 = vld [vmem:[#allocation2 + $0x1a8] sm:$0xff]
      %v970 = vld [vmem:[#allocation2 + $0x1b0] sm:$0xff]
      %v971 = vld [vmem:[#allocation2 + $0x1b8] sm:$0xff]
      %v972 = vld [vmem:[#allocation2 + $0x1c0] sm:$0xff]
      %v973 = vld [vmem:[#allocation2 + $0x1c8] sm:$0xff]
      %v974 = vld [vmem:[#allocation2 + $0x1d0] sm:$0xff]
      %v975 = vld [vmem:[#allocation2 + $0x1d8] sm:$0xff]
      %v976 = vld [vmem:[#allocation2 + $0x1e0] sm:$0xff]
      %v977 = vld [vmem:[#allocation2 + $0x1e8] sm:$0xff]
      %v978 = vld [vmem:[#allocation2 + $0x1f0] sm:$0xff]
      %v979 = vld [vmem:[#allocation2 + $0x1f8] sm:$0xff]
      %v980 = vld [vmem:[%s1] sm:$0xff]
      %v981 = vld [vmem:[%s1 + $0x8] sm:$0xff]
      %v982 = vld [vmem:[%s1 + $0x10] sm:$0xff]
      %v983 = vld [vmem:[%s1 + $0x18] sm:$0xff]
      %v984 = vld [vmem:[%s1 + $0x20] sm:$0xff]
      %v985 = vld [vmem:[%s1 + $0x28] sm:$0xff]
      %v986 = vld [vmem:[%s1 + $0x30] sm:$0xff]
      %v987 = vld [vmem:[%s1 + $0x38] sm:$0xff]
      %v988 = vld [vmem:[%s1 + $0x40] sm:$0xff]
      %v989 = vld [vmem:[%s1 + $0x48] sm:$0xff]
      %v990 = vld [vmem:[%s1 + $0x50] sm:$0xff]
      %v991 = vld [vmem:[%s1 + $0x58] sm:$0xff]
      %v992 = vld [vmem:[%s1 + $0x60] sm:$0xff]
      %v993 = vld [vmem:[%s1 + $0x68] sm:$0xff]
      %v994 = vld [vmem:[%s1 + $0x70] sm:$0xff]
      %v995 = vld [vmem:[%s1 + $0x78] sm:$0xff]
      %v996 = vld [vmem:[%s1 + $0x80] sm:$0xff]
      %v997 = vld [vmem:[%s1 + $0x88] sm:$0xff]
      %v998 = vld [vmem:[%s1 + $0x90] sm:$0xff]
      %v999 = vld [vmem:[%s1 + $0x98] sm:$0xff]
      %v1000 = vld [vmem:[%s1 + $0xa0] sm:$0xff]
      %v1001 = vld [vmem:[%s1 + $0xa8] sm:$0xff]
      %v1002 = vld [vmem:[%s1 + $0xb0] sm:$0xff]
      %v1003 = vld [vmem:[%s1 + $0xb8] sm:$0xff]
      %v1004 = vld [vmem:[%s1 + $0xc0] sm:$0xff]
      %v1005 = vld [vmem:[%s1 + $0xc8] sm:$0xff]
      %v1006 = vld [vmem:[%s1 + $0xd0] sm:$0xff]
      %v1007 = vld [vmem:[%s1 + $0xd8] sm:$0xff]
      %v1008 = vld [vmem:[%s1 + $0xe0] sm:$0xff]
      %v1009 = vld [vmem:[%s1 + $0xe8] sm:$0xff]
      %v1010 = vld [vmem:[%s1 + $0xf0] sm:$0xff]
      %v1011 = vld [vmem:[%s1 + $0xf8] sm:$0xff]
      %v1012 = vld [vmem:[%s1 + $0x100] sm:$0xff]
      %v1013 = vld [vmem:[%s1 + $0x108] sm:$0xff]
      %v1014 = vld [vmem:[%s1 + $0x110] sm:$0xff]
      %v1015 = vld [vmem:[%s1 + $0x118] sm:$0xff]
      %v1016 = vld [vmem:[%s1 + $0x120] sm:$0xff]
      %v1017 = vld [vmem:[%s1 + $0x128] sm:$0xff]
      %v1018 = vld [vmem:[%s1 + $0x130] sm:$0xff]
      %v1019 = vld [vmem:[%s1 + $0x138] sm:$0xff]
      %v1020 = vld [vmem:[%s1 + $0x140] sm:$0xff]
      %v1021 = vld [vmem:[%s1 + $0x148] sm:$0xff]
      %v1022 = vld [vmem:[%s1 + $0x150] sm:$0xff]
      %v1023 = vld [vmem:[%s1 + $0x158] sm:$0xff]
      %v1024 = vld [vmem:[%s1 + $0x160] sm:$0xff]
      %v1025 = vld [vmem:[%s1 + $0x168] sm:$0xff]
      %v1026 = vld [vmem:[%s1 + $0x170] sm:$0xff]
      %v1027 = vld [vmem:[%s1 + $0x178] sm:$0xff]
      %v1028 = vld [vmem:[%s1 + $0x180] sm:$0xff]
      %v1029 = vld [vmem:[%s1 + $0x188] sm:$0xff]
      %v1030 = vld [vmem:[%s1 + $0x190] sm:$0xff]
      %v1031 = vld [vmem:[%s1 + $0x198] sm:$0xff]
      %v1032 = vld [vmem:[%s1 + $0x1a0] sm:$0xff]
      %v1033 = vld [vmem:[%s1 + $0x1a8] sm:$0xff]
      %v1034 = vld [vmem:[%s1 + $0x1b0] sm:$0xff]
      %v1035 = vld [vmem:[%s1 + $0x1b8] sm:$0xff]
      %v1036 = vld [vmem:[%s1 + $0x1c0] sm:$0xff]
      %v1037 = vld [vmem:[%s1 + $0x1c8] sm:$0xff]
      %v1038 = vld [vmem:[%s1 + $0x1d0] sm:$0xff]
      %v1039 = vld [vmem:[%s1 + $0x1d8] sm:$0xff]
      %v1040 = vld [vmem:[%s1 + $0x1e0] sm:$0xff]
      %v1041 = vld [vmem:[%s1 + $0x1e8] sm:$0xff]
      %v1042 = vld [vmem:[%s1 + $0x1f0] sm:$0xff]
      %v1043 = vld [vmem:[%s1 + $0x1f8] sm:$0xff]
      %v1044 = vadd.f32 %v980, 1e-08
      %v1045 = vadd.f32 %v981, 1e-08
      %v1046 = vadd.f32 %v982, 1e-08
      %v1047 = vadd.f32 %v983, 1e-08
      %v1048 = vadd.f32 %v984, 1e-08
      %v1049 = vadd.f32 %v985, 1e-08
      %v1050 = vadd.f32 %v986, 1e-08
      %v1051 = vadd.f32 %v987, 1e-08
      %v1052 = vadd.f32 %v988, 1e-08
      %v1053 = vadd.f32 %v989, 1e-08
      %v1054 = vadd.f32 %v990, 1e-08
      %v1055 = vadd.f32 %v991, 1e-08
      %v1056 = vadd.f32 %v992, 1e-08
      %v1057 = vadd.f32 %v993, 1e-08
      %v1058 = vadd.f32 %v994, 1e-08
      %v1059 = vadd.f32 %v995, 1e-08
      %v1060 = vadd.f32 %v996, 1e-08
      %v1061 = vadd.f32 %v997, 1e-08
      %v1062 = vadd.f32 %v998, 1e-08
      %v1063 = vadd.f32 %v999, 1e-08
      %v1064 = vadd.f32 %v1000, 1e-08
      %v1065 = vadd.f32 %v1001, 1e-08
      %v1066 = vadd.f32 %v1002, 1e-08
      %v1067 = vadd.f32 %v1003, 1e-08
      %v1068 = vadd.f32 %v1004, 1e-08
      %v1069 = vadd.f32 %v1005, 1e-08
      %v1070 = vadd.f32 %v1006, 1e-08
      %v1071 = vadd.f32 %v1007, 1e-08
      %v1072 = vadd.f32 %v1008, 1e-08
      %v1073 = vadd.f32 %v1009, 1e-08
      %v1074 = vadd.f32 %v1010, 1e-08
      %v1075 = vadd.f32 %v1011, 1e-08
      %v1076 = vadd.f32 %v1012, 1e-08
      %v1077 = vadd.f32 %v1013, 1e-08
      %v1078 = vadd.f32 %v1014, 1e-08
      %v1079 = vadd.f32 %v1015, 1e-08
      %v1080 = vadd.f32 %v1016, 1e-08
      %v1081 = vadd.f32 %v1017, 1e-08
      %v1082 = vadd.f32 %v1018, 1e-08
      %v1083 = vadd.f32 %v1019, 1e-08
      %v1084 = vadd.f32 %v1020, 1e-08
      %v1085 = vadd.f32 %v1021, 1e-08
      %v1086 = vadd.f32 %v1022, 1e-08
      %v1087 = vadd.f32 %v1023, 1e-08
      %v1088 = vadd.f32 %v1024, 1e-08
      %v1089 = vadd.f32 %v1025, 1e-08
      %v1090 = vadd.f32 %v1026, 1e-08
      %v1091 = vadd.f32 %v1027, 1e-08
      %v1092 = vadd.f32 %v1028, 1e-08
      %v1093 = vadd.f32 %v1029, 1e-08
      %v1094 = vadd.f32 %v1030, 1e-08
      %v1095 = vadd.f32 %v1031, 1e-08
      %v1096 = vadd.f32 %v1032, 1e-08
      %v1097 = vadd.f32 %v1033, 1e-08
      %v1098 = vadd.f32 %v1034, 1e-08
      %v1099 = vadd.f32 %v1035, 1e-08
      %v1100 = vadd.f32 %v1036, 1e-08
      %v1101 = vadd.f32 %v1037, 1e-08
      %v1102 = vadd.f32 %v1038, 1e-08
      %v1103 = vadd.f32 %v1039, 1e-08
      %v1104 = vadd.f32 %v1040, 1e-08
      %v1105 = vadd.f32 %v1041, 1e-08
      %v1106 = vadd.f32 %v1042, 1e-08
      %v1107 = vadd.f32 %v1043, 1e-08
      %v1108 = vrcp.pop %v1044
      %v1109 = vrcp.pop %v1045
      %v1110 = vrcp.pop %v1046
      %v1111 = vrcp.pop %v1047
      %v1112 = vrcp.pop %v1048
      %v1113 = vrcp.pop %v1049
      %v1114 = vrcp.pop %v1050
      %v1115 = vrcp.pop %v1051
      %v1116 = vrcp.pop %v1052
      %v1117 = vrcp.pop %v1053
      %v1118 = vrcp.pop %v1054
      %v1119 = vrcp.pop %v1055
      %v1120 = vrcp.pop %v1056
      %v1121 = vrcp.pop %v1057
      %v1122 = vrcp.pop %v1058
      %v1123 = vrcp.pop %v1059
      %v1124 = vrcp.pop %v1060
      %v1125 = vrcp.pop %v1061
      %v1126 = vrcp.pop %v1062
      %v1127 = vrcp.pop %v1063
      %v1128 = vrcp.pop %v1064
      %v1129 = vrcp.pop %v1065
      %v1130 = vrcp.pop %v1066
      %v1131 = vrcp.pop %v1067
      %v1132 = vrcp.pop %v1068
      %v1133 = vrcp.pop %v1069
      %v1134 = vrcp.pop %v1070
      %v1135 = vrcp.pop %v1071
      %v1136 = vrcp.pop %v1072
      %v1137 = vrcp.pop %v1073
      %v1138 = vrcp.pop %v1074
      %v1139 = vrcp.pop %v1075
      %v1140 = vrcp.pop %v1076
      %v1141 = vrcp.pop %v1077
      %v1142 = vrcp.pop %v1078
      %v1143 = vrcp.pop %v1079
      %v1144 = vrcp.pop %v1080
      %v1145 = vrcp.pop %v1081
      %v1146 = vrcp.pop %v1082
      %v1147 = vrcp.pop %v1083
      %v1148 = vrcp.pop %v1084
      %v1149 = vrcp.pop %v1085
      %v1150 = vrcp.pop %v1086
      %v1151 = vrcp.pop %v1087
      %v1152 = vrcp.pop %v1088
      %v1153 = vrcp.pop %v1089
      %v1154 = vrcp.pop %v1090
      %v1155 = vrcp.pop %v1091
      %v1156 = vrcp.pop %v1092
      %v1157 = vrcp.pop %v1093
      %v1158 = vrcp.pop %v1094
      %v1159 = vrcp.pop %v1095
      %v1160 = vrcp.pop %v1096
      %v1161 = vrcp.pop %v1097
      %v1162 = vrcp.pop %v1098
      %v1163 = vrcp.pop %v1099
      %v1164 = vrcp.pop %v1100
      %v1165 = vrcp.pop %v1101
      %v1166 = vrcp.pop %v1102
      %v1167 = vrcp.pop %v1103
      %v1168 = vrcp.pop %v1104
      %v1169 = vrcp.pop %v1105
      %v1170 = vrcp.pop %v1106
      %v1171 = vrcp.pop %v1107
      %v1172 = vmul.f32 %v1108, 36.0
      %v1173 = vmul.f32 %v1109, 36.0
      %v1174 = vmul.f32 %v1110, 36.0
      %v1175 = vmul.f32 %v1111, 36.0
      %v1176 = vmul.f32 %v1112, 36.0
      %v1177 = vmul.f32 %v1113, 36.0
      %v1178 = vmul.f32 %v1114, 36.0
      %v1179 = vmul.f32 %v1115, 36.0
      %v1180 = vmul.f32 %v1116, 36.0
      %v1181 = vmul.f32 %v1117, 36.0
      %v1182 = vmul.f32 %v1118, 36.0
      %v1183 = vmul.f32 %v1119, 36.0
      %v1184 = vmul.f32 %v1120, 36.0
      %v1185 = vmul.f32 %v1121, 36.0
      %v1186 = vmul.f32 %v1122, 36.0
      %v1187 = vmul.f32 %v1123, 36.0
      %v1188 = vmul.f32 %v1124, 36.0
      %v1189 = vmul.f32 %v1125, 36.0
      %v1190 = vmul.f32 %v1126, 36.0
      %v1191 = vmul.f32 %v1127, 36.0
      %v1192 = vmul.f32 %v1128, 36.0
      %v1193 = vmul.f32 %v1129, 36.0
      %v1194 = vmul.f32 %v1130, 36.0
      %v1195 = vmul.f32 %v1131, 36.0
      %v1196 = vmul.f32 %v1132, 36.0
      %v1197 = vmul.f32 %v1133, 36.0
      %v1198 = vmul.f32 %v1134, 36.0
      %v1199 = vmul.f32 %v1135, 36.0
      %v1200 = vmul.f32 %v1136, 36.0
      %v1201 = vmul.f32 %v1137, 36.0
      %v1202 = vmul.f32 %v1138, 36.0
      %v1203 = vmul.f32 %v1139, 36.0
      %v1204 = vmul.f32 %v1140, 36.0
      %v1205 = vmul.f32 %v1141, 36.0
      %v1206 = vmul.f32 %v1142, 36.0
      %v1207 = vmul.f32 %v1143, 36.0
      %v1208 = vmul.f32 %v1144, 36.0
      %v1209 = vmul.f32 %v1145, 36.0
      %v1210 = vmul.f32 %v1146, 36.0
      %v1211 = vmul.f32 %v1147, 36.0
      %v1212 = vmul.f32 %v1148, 36.0
      %v1213 = vmul.f32 %v1149, 36.0
      %v1214 = vmul.f32 %v1150, 36.0
      %v1215 = vmul.f32 %v1151, 36.0
      %v1216 = vmul.f32 %v1152, 36.0
      %v1217 = vmul.f32 %v1153, 36.0
      %v1218 = vmul.f32 %v1154, 36.0
      %v1219 = vmul.f32 %v1155, 36.0
      %v1220 = vmul.f32 %v1156, 36.0
      %v1221 = vmul.f32 %v1157, 36.0
      %v1222 = vmul.f32 %v1158, 36.0
      %v1223 = vmul.f32 %v1159, 36.0
      %v1224 = vmul.f32 %v1160, 36.0
      %v1225 = vmul.f32 %v1161, 36.0
      %v1226 = vmul.f32 %v1162, 36.0
      %v1227 = vmul.f32 %v1163, 36.0
      %v1228 = vmul.f32 %v1164, 36.0
      %v1229 = vmul.f32 %v1165, 36.0
      %v1230 = vmul.f32 %v1166, 36.0
      %v1231 = vmul.f32 %v1167, 36.0
      %v1232 = vmul.f32 %v1168, 36.0
      %v1233 = vmul.f32 %v1169, 36.0
      %v1234 = vmul.f32 %v1170, 36.0
      %v1235 = vmul.f32 %v1171, 36.0
      %v1236 = vmax.f32 %v980, 0.0
      %v1237 = vmax.f32 %v981, 0.0
      %v1238 = vmax.f32 %v982, 0.0
      %v1239 = vmax.f32 %v983, 0.0
      %v1240 = vmax.f32 %v984, 0.0
      %v1241 = vmax.f32 %v985, 0.0
      %v1242 = vmax.f32 %v986, 0.0
      %v1243 = vmax.f32 %v987, 0.0
      %v1244 = vmax.f32 %v988, 0.0
      %v1245 = vmax.f32 %v989, 0.0
      %v1246 = vmax.f32 %v990, 0.0
      %v1247 = vmax.f32 %v991, 0.0
      %v1248 = vmax.f32 %v992, 0.0
      %v1249 = vmax.f32 %v993, 0.0
      %v1250 = vmax.f32 %v994, 0.0
      %v1251 = vmax.f32 %v995, 0.0
      %v1252 = vmax.f32 %v996, 0.0
      %v1253 = vmax.f32 %v997, 0.0
      %v1254 = vmax.f32 %v998, 0.0
      %v1255 = vmax.f32 %v999, 0.0
      %v1256 = vmax.f32 %v1000, 0.0
      %v1257 = vmax.f32 %v1001, 0.0
      %v1258 = vmax.f32 %v1002, 0.0
      %v1259 = vmax.f32 %v1003, 0.0
      %v1260 = vmax.f32 %v1004, 0.0
      %v1261 = vmax.f32 %v1005, 0.0
      %v1262 = vmax.f32 %v1006, 0.0
      %v1263 = vmax.f32 %v1007, 0.0
      %v1264 = vmax.f32 %v1008, 0.0
      %v1265 = vmax.f32 %v1009, 0.0
      %v1266 = vmax.f32 %v1010, 0.0
      %v1267 = vmax.f32 %v1011, 0.0
      %v1268 = vmax.f32 %v1012, 0.0
      %v1269 = vmax.f32 %v1013, 0.0
      %v1270 = vmax.f32 %v1014, 0.0
      %v1271 = vmax.f32 %v1015, 0.0
      %v1272 = vmax.f32 %v1016, 0.0
      %v1273 = vmax.f32 %v1017, 0.0
      %v1274 = vmax.f32 %v1018, 0.0
      %v1275 = vmax.f32 %v1019, 0.0
      %v1276 = vmax.f32 %v1020, 0.0
      %v1277 = vmax.f32 %v1021, 0.0
      %v1278 = vmax.f32 %v1022, 0.0
      %v1279 = vmax.f32 %v1023, 0.0
      %v1280 = vmax.f32 %v1024, 0.0
      %v1281 = vmax.f32 %v1025, 0.0
      %v1282 = vmax.f32 %v1026, 0.0
      %v1283 = vmax.f32 %v1027, 0.0
      %v1284 = vmax.f32 %v1028, 0.0
      %v1285 = vmax.f32 %v1029, 0.0
      %v1286 = vmax.f32 %v1030, 0.0
      %v1287 = vmax.f32 %v1031, 0.0
      %v1288 = vmax.f32 %v1032, 0.0
      %v1289 = vmax.f32 %v1033, 0.0
      %v1290 = vmax.f32 %v1034, 0.0
      %v1291 = vmax.f32 %v1035, 0.0
      %v1292 = vmax.f32 %v1036, 0.0
      %v1293 = vmax.f32 %v1037, 0.0
      %v1294 = vmax.f32 %v1038, 0.0
      %v1295 = vmax.f32 %v1039, 0.0
      %v1296 = vmax.f32 %v1040, 0.0
      %v1297 = vmax.f32 %v1041, 0.0
      %v1298 = vmax.f32 %v1042, 0.0
      %v1299 = vmax.f32 %v1043, 0.0
      %v1300 = vmin.f32 %v1236, 1.0
      %v1301 = vmin.f32 %v1237, 1.0
      %v1302 = vmin.f32 %v1238, 1.0
      %v1303 = vmin.f32 %v1239, 1.0
      %v1304 = vmin.f32 %v1240, 1.0
      %v1305 = vmin.f32 %v1241, 1.0
      %v1306 = vmin.f32 %v1242, 1.0
      %v1307 = vmin.f32 %v1243, 1.0
      %v1308 = vmin.f32 %v1244, 1.0
      %v1309 = vmin.f32 %v1245, 1.0
      %v1310 = vmin.f32 %v1246, 1.0
      %v1311 = vmin.f32 %v1247, 1.0
      %v1312 = vmin.f32 %v1248, 1.0
      %v1313 = vmin.f32 %v1249, 1.0
      %v1314 = vmin.f32 %v1250, 1.0
      %v1315 = vmin.f32 %v1251, 1.0
      %v1316 = vmin.f32 %v1252, 1.0
      %v1317 = vmin.f32 %v1253, 1.0
      %v1318 = vmin.f32 %v1254, 1.0
      %v1319 = vmin.f32 %v1255, 1.0
      %v1320 = vmin.f32 %v1256, 1.0
      %v1321 = vmin.f32 %v1257, 1.0
      %v1322 = vmin.f32 %v1258, 1.0
      %v1323 = vmin.f32 %v1259, 1.0
      %v1324 = vmin.f32 %v1260, 1.0
      %v1325 = vmin.f32 %v1261, 1.0
      %v1326 = vmin.f32 %v1262, 1.0
      %v1327 = vmin.f32 %v1263, 1.0
      %v1328 = vmin.f32 %v1264, 1.0
      %v1329 = vmin.f32 %v1265, 1.0
      %v1330 = vmin.f32 %v1266, 1.0
      %v1331 = vmin.f32 %v1267, 1.0
      %v1332 = vmin.f32 %v1268, 1.0
      %v1333 = vmin.f32 %v1269, 1.0
      %v1334 = vmin.f32 %v1270, 1.0
      %v1335 = vmin.f32 %v1271, 1.0
      %v1336 = vmin.f32 %v1272, 1.0
      %v1337 = vmin.f32 %v1273, 1.0
      %v1338 = vmin.f32 %v1274, 1.0
      %v1339 = vmin.f32 %v1275, 1.0
      %v1340 = vmin.f32 %v1276, 1.0
      %v1341 = vmin.f32 %v1277, 1.0
      %v1342 = vmin.f32 %v1278, 1.0
      %v1343 = vmin.f32 %v1279, 1.0
      %v1344 = vmin.f32 %v1280, 1.0
      %v1345 = vmin.f32 %v1281, 1.0
      %v1346 = vmin.f32 %v1282, 1.0
      %v1347 = vmin.f32 %v1283, 1.0
      %v1348 = vmin.f32 %v1284, 1.0
      %v1349 = vmin.f32 %v1285, 1.0
      %v1350 = vmin.f32 %v1286, 1.0
      %v1351 = vmin.f32 %v1287, 1.0
      %v1352 = vmin.f32 %v1288, 1.0
      %v1353 = vmin.f32 %v1289, 1.0
      %v1354 = vmin.f32 %v1290, 1.0
      %v1355 = vmin.f32 %v1291, 1.0
      %v1356 = vmin.f32 %v1292, 1.0
      %v1357 = vmin.f32 %v1293, 1.0
      %v1358 = vmin.f32 %v1294, 1.0
      %v1359 = vmin.f32 %v1295, 1.0
      %v1360 = vmin.f32 %v1296, 1.0
      %v1361 = vmin.f32 %v1297, 1.0
      %v1362 = vmin.f32 %v1298, 1.0
      %v1363 = vmin.f32 %v1299, 1.0
      %v1364 = vmul.f32 %v1172, %v1300
      %v1365 = vmul.f32 %v1173, %v1301
      %v1366 = vmul.f32 %v1174, %v1302
      %v1367 = vmul.f32 %v1175, %v1303
      %v1368 = vmul.f32 %v1176, %v1304
      %v1369 = vmul.f32 %v1177, %v1305
      %v1370 = vmul.f32 %v1178, %v1306
      %v1371 = vmul.f32 %v1179, %v1307
      %v1372 = vmul.f32 %v1180, %v1308
      %v1373 = vmul.f32 %v1181, %v1309
      %v1374 = vmul.f32 %v1182, %v1310
      %v1375 = vmul.f32 %v1183, %v1311
      %v1376 = vmul.f32 %v1184, %v1312
      %v1377 = vmul.f32 %v1185, %v1313
      %v1378 = vmul.f32 %v1186, %v1314
      %v1379 = vmul.f32 %v1187, %v1315
      %v1380 = vmul.f32 %v1188, %v1316
      %v1381 = vmul.f32 %v1189, %v1317
      %v1382 = vmul.f32 %v1190, %v1318
      %v1383 = vmul.f32 %v1191, %v1319
      %v1384 = vmul.f32 %v1192, %v1320
      %v1385 = vmul.f32 %v1193, %v1321
      %v1386 = vmul.f32 %v1194, %v1322
      %v1387 = vmul.f32 %v1195, %v1323
      %v1388 = vmul.f32 %v1196, %v1324
      %v1389 = vmul.f32 %v1197, %v1325
      %v1390 = vmul.f32 %v1198, %v1326
      %v1391 = vmul.f32 %v1199, %v1327
      %v1392 = vmul.f32 %v1200, %v1328
      %v1393 = vmul.f32 %v1201, %v1329
      %v1394 = vmul.f32 %v1202, %v1330
      %v1395 = vmul.f32 %v1203, %v1331
      %v1396 = vmul.f32 %v1204, %v1332
      %v1397 = vmul.f32 %v1205, %v1333
      %v1398 = vmul.f32 %v1206, %v1334
      %v1399 = vmul.f32 %v1207, %v1335
      %v1400 = vmul.f32 %v1208, %v1336
      %v1401 = vmul.f32 %v1209, %v1337
      %v1402 = vmul.f32 %v1210, %v1338
      %v1403 = vmul.f32 %v1211, %v1339
      %v1404 = vmul.f32 %v1212, %v1340
      %v1405 = vmul.f32 %v1213, %v1341
      %v1406 = vmul.f32 %v1214, %v1342
      %v1407 = vmul.f32 %v1215, %v1343
      %v1408 = vmul.f32 %v1216, %v1344
      %v1409 = vmul.f32 %v1217, %v1345
      %v1410 = vmul.f32 %v1218, %v1346
      %v1411 = vmul.f32 %v1219, %v1347
      %v1412 = vmul.f32 %v1220, %v1348
      %v1413 = vmul.f32 %v1221, %v1349
      %v1414 = vmul.f32 %v1222, %v1350
      %v1415 = vmul.f32 %v1223, %v1351
      %v1416 = vmul.f32 %v1224, %v1352
      %v1417 = vmul.f32 %v1225, %v1353
      %v1418 = vmul.f32 %v1226, %v1354
      %v1419 = vmul.f32 %v1227, %v1355
      %v1420 = vmul.f32 %v1228, %v1356
      %v1421 = vmul.f32 %v1229, %v1357
      %v1422 = vmul.f32 %v1230, %v1358
      %v1423 = vmul.f32 %v1231, %v1359
      %v1424 = vmul.f32 %v1232, %v1360
      %v1425 = vmul.f32 %v1233, %v1361
      %v1426 = vmul.f32 %v1234, %v1362
      %v1427 = vmul.f32 %v1235, %v1363
      %v1428 = vld [vmem:[%s3] sm:$0x1]
      %1430 = vset.pattern.permute.xlu0 0
      %1431 = vperm.xlu0 %1430, %v1364
      %v1432 = vpop.permute.xlu0 %1431
      %1435 = vset.pattern.permute.xlu0 0
      %1436 = vperm.xlu0 %1435, %v1365
      %v1437 = vpop.permute.xlu0 %1436
      %1440 = vset.pattern.permute.xlu0 0
      %1441 = vperm.xlu0 %1440, %v1366
      %v1442 = vpop.permute.xlu0 %1441
      %1445 = vset.pattern.permute.xlu0 0
      %1446 = vperm.xlu0 %1445, %v1367
      %v1447 = vpop.permute.xlu0 %1446
      %1450 = vset.pattern.permute.xlu0 0
      %1451 = vperm.xlu0 %1450, %v1368
      %v1452 = vpop.permute.xlu0 %1451
      %1455 = vset.pattern.permute.xlu0 0
      %1456 = vperm.xlu0 %1455, %v1369
      %v1457 = vpop.permute.xlu0 %1456
      %1460 = vset.pattern.permute.xlu0 0
      %1461 = vperm.xlu0 %1460, %v1370
      %v1462 = vpop.permute.xlu0 %1461
      %1465 = vset.pattern.permute.xlu0 0
      %1466 = vperm.xlu0 %1465, %v1371
      %v1467 = vpop.permute.xlu0 %1466
      %1470 = vset.pattern.permute.xlu0 0
      %1471 = vperm.xlu0 %1470, %v1372
      %v1472 = vpop.permute.xlu0 %1471
      %1475 = vset.pattern.permute.xlu0 0
      %1476 = vperm.xlu0 %1475, %v1373
      %v1477 = vpop.permute.xlu0 %1476
      %1480 = vset.pattern.permute.xlu0 0
      %1481 = vperm.xlu0 %1480, %v1374
      %v1482 = vpop.permute.xlu0 %1481
      %1485 = vset.pattern.permute.xlu0 0
      %1486 = vperm.xlu0 %1485, %v1375
      %v1487 = vpop.permute.xlu0 %1486
      %1490 = vset.pattern.permute.xlu0 0
      %1491 = vperm.xlu0 %1490, %v1376
      %v1492 = vpop.permute.xlu0 %1491
      %1495 = vset.pattern.permute.xlu0 0
      %1496 = vperm.xlu0 %1495, %v1377
      %v1497 = vpop.permute.xlu0 %1496
      %1500 = vset.pattern.permute.xlu0 0
      %1501 = vperm.xlu0 %1500, %v1378
      %v1502 = vpop.permute.xlu0 %1501
      %1505 = vset.pattern.permute.xlu0 0
      %1506 = vperm.xlu0 %1505, %v1379
      %v1507 = vpop.permute.xlu0 %1506
      %1510 = vset.pattern.permute.xlu0 0
      %1511 = vperm.xlu0 %1510, %v1380
      %v1512 = vpop.permute.xlu0 %1511
      %1515 = vset.pattern.permute.xlu0 0
      %1516 = vperm.xlu0 %1515, %v1381
      %v1517 = vpop.permute.xlu0 %1516
      %1520 = vset.pattern.permute.xlu0 0
      %1521 = vperm.xlu0 %1520, %v1382
      %v1522 = vpop.permute.xlu0 %1521
      %1525 = vset.pattern.permute.xlu0 0
      %1526 = vperm.xlu0 %1525, %v1383
      %v1527 = vpop.permute.xlu0 %1526
      %1530 = vset.pattern.permute.xlu0 0
      %1531 = vperm.xlu0 %1530, %v1384
      %v1532 = vpop.permute.xlu0 %1531
      %1535 = vset.pattern.permute.xlu0 0
      %1536 = vperm.xlu0 %1535, %v1385
      %v1537 = vpop.permute.xlu0 %1536
      %1540 = vset.pattern.permute.xlu0 0
      %1541 = vperm.xlu0 %1540, %v1386
      %v1542 = vpop.permute.xlu0 %1541
      %1545 = vset.pattern.permute.xlu0 0
      %1546 = vperm.xlu0 %1545, %v1387
      %v1547 = vpop.permute.xlu0 %1546
      %1550 = vset.pattern.permute.xlu0 0
      %1551 = vperm.xlu0 %1550, %v1388
      %v1552 = vpop.permute.xlu0 %1551
      %1555 = vset.pattern.permute.xlu0 0
      %1556 = vperm.xlu0 %1555, %v1389
      %v1557 = vpop.permute.xlu0 %1556
      %1560 = vset.pattern.permute.xlu0 0
      %1561 = vperm.xlu0 %1560, %v1390
      %v1562 = vpop.permute.xlu0 %1561
      %1565 = vset.pattern.permute.xlu0 0
      %1566 = vperm.xlu0 %1565, %v1391
      %v1567 = vpop.permute.xlu0 %1566
      %1570 = vset.pattern.permute.xlu0 0
      %1571 = vperm.xlu0 %1570, %v1392
      %v1572 = vpop.permute.xlu0 %1571
      %1575 = vset.pattern.permute.xlu0 0
      %1576 = vperm.xlu0 %1575, %v1393
      %v1577 = vpop.permute.xlu0 %1576
      %1580 = vset.pattern.permute.xlu0 0
      %1581 = vperm.xlu0 %1580, %v1394
      %v1582 = vpop.permute.xlu0 %1581
      %1585 = vset.pattern.permute.xlu0 0
      %1586 = vperm.xlu0 %1585, %v1395
      %v1587 = vpop.permute.xlu0 %1586
      %1590 = vset.pattern.permute.xlu0 0
      %1591 = vperm.xlu0 %1590, %v1396
      %v1592 = vpop.permute.xlu0 %1591
      %1595 = vset.pattern.permute.xlu0 0
      %1596 = vperm.xlu0 %1595, %v1397
      %v1597 = vpop.permute.xlu0 %1596
      %1600 = vset.pattern.permute.xlu0 0
      %1601 = vperm.xlu0 %1600, %v1398
      %v1602 = vpop.permute.xlu0 %1601
      %1605 = vset.pattern.permute.xlu0 0
      %1606 = vperm.xlu0 %1605, %v1399
      %v1607 = vpop.permute.xlu0 %1606
      %1610 = vset.pattern.permute.xlu0 0
      %1611 = vperm.xlu0 %1610, %v1400
      %v1612 = vpop.permute.xlu0 %1611
      %1615 = vset.pattern.permute.xlu0 0
      %1616 = vperm.xlu0 %1615, %v1401
      %v1617 = vpop.permute.xlu0 %1616
      %1620 = vset.pattern.permute.xlu0 0
      %1621 = vperm.xlu0 %1620, %v1402
      %v1622 = vpop.permute.xlu0 %1621
      %1625 = vset.pattern.permute.xlu0 0
      %1626 = vperm.xlu0 %1625, %v1403
      %v1627 = vpop.permute.xlu0 %1626
      %1630 = vset.pattern.permute.xlu0 0
      %1631 = vperm.xlu0 %1630, %v1404
      %v1632 = vpop.permute.xlu0 %1631
      %1635 = vset.pattern.permute.xlu0 0
      %1636 = vperm.xlu0 %1635, %v1405
      %v1637 = vpop.permute.xlu0 %1636
      %1640 = vset.pattern.permute.xlu0 0
      %1641 = vperm.xlu0 %1640, %v1406
      %v1642 = vpop.permute.xlu0 %1641
      %1645 = vset.pattern.permute.xlu0 0
      %1646 = vperm.xlu0 %1645, %v1407
      %v1647 = vpop.permute.xlu0 %1646
      %1650 = vset.pattern.permute.xlu0 0
      %1651 = vperm.xlu0 %1650, %v1408
      %v1652 = vpop.permute.xlu0 %1651
      %1655 = vset.pattern.permute.xlu0 0
      %1656 = vperm.xlu0 %1655, %v1409
      %v1657 = vpop.permute.xlu0 %1656
      %1660 = vset.pattern.permute.xlu0 0
      %1661 = vperm.xlu0 %1660, %v1410
      %v1662 = vpop.permute.xlu0 %1661
      %1665 = vset.pattern.permute.xlu0 0
      %1666 = vperm.xlu0 %1665, %v1411
      %v1667 = vpop.permute.xlu0 %1666
      %1670 = vset.pattern.permute.xlu0 0
      %1671 = vperm.xlu0 %1670, %v1412
      %v1672 = vpop.permute.xlu0 %1671
      %1675 = vset.pattern.permute.xlu0 0
      %1676 = vperm.xlu0 %1675, %v1413
      %v1677 = vpop.permute.xlu0 %1676
      %1680 = vset.pattern.permute.xlu0 0
      %1681 = vperm.xlu0 %1680, %v1414
      %v1682 = vpop.permute.xlu0 %1681
      %1685 = vset.pattern.permute.xlu0 0
      %1686 = vperm.xlu0 %1685, %v1415
      %v1687 = vpop.permute.xlu0 %1686
      %1690 = vset.pattern.permute.xlu0 0
      %1691 = vperm.xlu0 %1690, %v1416
      %v1692 = vpop.permute.xlu0 %1691
      %1695 = vset.pattern.permute.xlu0 0
      %1696 = vperm.xlu0 %1695, %v1417
      %v1697 = vpop.permute.xlu0 %1696
      %1700 = vset.pattern.permute.xlu0 0
      %1701 = vperm.xlu0 %1700, %v1418
      %v1702 = vpop.permute.xlu0 %1701
      %1705 = vset.pattern.permute.xlu0 0
      %1706 = vperm.xlu0 %1705, %v1419
      %v1707 = vpop.permute.xlu0 %1706
      %1710 = vset.pattern.permute.xlu0 0
      %1711 = vperm.xlu0 %1710, %v1420
      %v1712 = vpop.permute.xlu0 %1711
      %1715 = vset.pattern.permute.xlu0 0
      %1716 = vperm.xlu0 %1715, %v1421
      %v1717 = vpop.permute.xlu0 %1716
      %1720 = vset.pattern.permute.xlu0 0
      %1721 = vperm.xlu0 %1720, %v1422
      %v1722 = vpop.permute.xlu0 %1721
      %1725 = vset.pattern.permute.xlu0 0
      %1726 = vperm.xlu0 %1725, %v1423
      %v1727 = vpop.permute.xlu0 %1726
      %1730 = vset.pattern.permute.xlu0 0
      %1731 = vperm.xlu0 %1730, %v1424
      %v1732 = vpop.permute.xlu0 %1731
      %1735 = vset.pattern.permute.xlu0 0
      %1736 = vperm.xlu0 %1735, %v1425
      %v1737 = vpop.permute.xlu0 %1736
      %1740 = vset.pattern.permute.xlu0 0
      %1741 = vperm.xlu0 %1740, %v1426
      %v1742 = vpop.permute.xlu0 %1741
      %1745 = vset.pattern.permute.xlu0 0
      %1746 = vperm.xlu0 %1745, %v1427
      %v1747 = vpop.permute.xlu0 %1746
      %v1749 = vmul.f32 %v916, %v1432
      %v1750 = vmul.f32 %v917, %v1437
      %v1751 = vmul.f32 %v918, %v1442
      %v1752 = vmul.f32 %v919, %v1447
      %v1753 = vmul.f32 %v920, %v1452
      %v1754 = vmul.f32 %v921, %v1457
      %v1755 = vmul.f32 %v922, %v1462
      %v1756 = vmul.f32 %v923, %v1467
      %v1757 = vmul.f32 %v924, %v1472
      %v1758 = vmul.f32 %v925, %v1477
      %v1759 = vmul.f32 %v926, %v1482
      %v1760 = vmul.f32 %v927, %v1487
      %v1761 = vmul.f32 %v928, %v1492
      %v1762 = vmul.f32 %v929, %v1497
      %v1763 = vmul.f32 %v930, %v1502
      %v1764 = vmul.f32 %v931, %v1507
      %v1765 = vmul.f32 %v932, %v1512
      %v1766 = vmul.f32 %v933, %v1517
      %v1767 = vmul.f32 %v934, %v1522
      %v1768 = vmul.f32 %v935, %v1527
      %v1769 = vmul.f32 %v936, %v1532
      %v1770 = vmul.f32 %v937, %v1537
      %v1771 = vmul.f32 %v938, %v1542
      %v1772 = vmul.f32 %v939, %v1547
      %v1773 = vmul.f32 %v940, %v1552
      %v1774 = vmul.f32 %v941, %v1557
      %v1775 = vmul.f32 %v942, %v1562
      %v1776 = vmul.f32 %v943, %v1567
      %v1777 = vmul.f32 %v944, %v1572
      %v1778 = vmul.f32 %v945, %v1577
      %v1779 = vmul.f32 %v946, %v1582
      %v1780 = vmul.f32 %v947, %v1587
      %v1781 = vmul.f32 %v948, %v1592
      %v1782 = vmul.f32 %v949, %v1597
      %v1783 = vmul.f32 %v950, %v1602
      %v1784 = vmul.f32 %v951, %v1607
      %v1785 = vmul.f32 %v952, %v1612
      %v1786 = vmul.f32 %v953, %v1617
      %v1787 = vmul.f32 %v954, %v1622
      %v1788 = vmul.f32 %v955, %v1627
      %v1789 = vmul.f32 %v956, %v1632
      %v1790 = vmul.f32 %v957, %v1637
      %v1791 = vmul.f32 %v958, %v1642
      %v1792 = vmul.f32 %v959, %v1647
      %v1793 = vmul.f32 %v960, %v1652
      %v1794 = vmul.f32 %v961, %v1657
      %v1795 = vmul.f32 %v962, %v1662
      %v1796 = vmul.f32 %v963, %v1667
      %v1797 = vmul.f32 %v964, %v1672
      %v1798 = vmul.f32 %v965, %v1677
      %v1799 = vmul.f32 %v966, %v1682
      %v1800 = vmul.f32 %v967, %v1687
      %v1801 = vmul.f32 %v968, %v1692
      %v1802 = vmul.f32 %v969, %v1697
      %v1803 = vmul.f32 %v970, %v1702
      %v1804 = vmul.f32 %v971, %v1707
      %v1805 = vmul.f32 %v972, %v1712
      %v1806 = vmul.f32 %v973, %v1717
      %v1807 = vmul.f32 %v974, %v1722
      %v1808 = vmul.f32 %v975, %v1727
      %v1809 = vmul.f32 %v976, %v1732
      %v1810 = vmul.f32 %v977, %v1737
      %v1811 = vmul.f32 %v978, %v1742
      %v1812 = vmul.f32 %v979, %v1747
      %v1814 = vlaneseq
      %v1815 = vshrl.u32 %v1814, 7
      %v1816 = vsub.s32 0, %v1815
      %v1817 = vrot.slane %v1428, %v1816
      %v1819 = vadd.f32 %v1749, %v1817
      %v1820 = vadd.f32 %v1750, %v1817
      %v1821 = vadd.f32 %v1751, %v1817
      %v1822 = vadd.f32 %v1752, %v1817
      %v1823 = vadd.f32 %v1753, %v1817
      %v1824 = vadd.f32 %v1754, %v1817
      %v1825 = vadd.f32 %v1755, %v1817
      %v1826 = vadd.f32 %v1756, %v1817
      %v1827 = vadd.f32 %v1757, %v1817
      %v1828 = vadd.f32 %v1758, %v1817
      %v1829 = vadd.f32 %v1759, %v1817
      %v1830 = vadd.f32 %v1760, %v1817
      %v1831 = vadd.f32 %v1761, %v1817
      %v1832 = vadd.f32 %v1762, %v1817
      %v1833 = vadd.f32 %v1763, %v1817
      %v1834 = vadd.f32 %v1764, %v1817
      %v1835 = vadd.f32 %v1765, %v1817
      %v1836 = vadd.f32 %v1766, %v1817
      %v1837 = vadd.f32 %v1767, %v1817
      %v1838 = vadd.f32 %v1768, %v1817
      %v1839 = vadd.f32 %v1769, %v1817
      %v1840 = vadd.f32 %v1770, %v1817
      %v1841 = vadd.f32 %v1771, %v1817
      %v1842 = vadd.f32 %v1772, %v1817
      %v1843 = vadd.f32 %v1773, %v1817
      %v1844 = vadd.f32 %v1774, %v1817
      %v1845 = vadd.f32 %v1775, %v1817
      %v1846 = vadd.f32 %v1776, %v1817
      %v1847 = vadd.f32 %v1777, %v1817
      %v1848 = vadd.f32 %v1778, %v1817
      %v1849 = vadd.f32 %v1779, %v1817
      %v1850 = vadd.f32 %v1780, %v1817
      %v1851 = vadd.f32 %v1781, %v1817
      %v1852 = vadd.f32 %v1782, %v1817
      %v1853 = vadd.f32 %v1783, %v1817
      %v1854 = vadd.f32 %v1784, %v1817
      %v1855 = vadd.f32 %v1785, %v1817
      %v1856 = vadd.f32 %v1786, %v1817
      %v1857 = vadd.f32 %v1787, %v1817
      %v1858 = vadd.f32 %v1788, %v1817
      %v1859 = vadd.f32 %v1789, %v1817
      %v1860 = vadd.f32 %v1790, %v1817
      %v1861 = vadd.f32 %v1791, %v1817
      %v1862 = vadd.f32 %v1792, %v1817
      %v1863 = vadd.f32 %v1793, %v1817
      %v1864 = vadd.f32 %v1794, %v1817
      %v1865 = vadd.f32 %v1795, %v1817
      %v1866 = vadd.f32 %v1796, %v1817
      %v1867 = vadd.f32 %v1797, %v1817
      %v1868 = vadd.f32 %v1798, %v1817
      %v1869 = vadd.f32 %v1799, %v1817
      %v1870 = vadd.f32 %v1800, %v1817
      %v1871 = vadd.f32 %v1801, %v1817
      %v1872 = vadd.f32 %v1802, %v1817
      %v1873 = vadd.f32 %v1803, %v1817
      %v1874 = vadd.f32 %v1804, %v1817
      %v1875 = vadd.f32 %v1805, %v1817
      %v1876 = vadd.f32 %v1806, %v1817
      %v1877 = vadd.f32 %v1807, %v1817
      %v1878 = vadd.f32 %v1808, %v1817
      %v1879 = vadd.f32 %v1809, %v1817
      %v1880 = vadd.f32 %v1810, %v1817
      %v1881 = vadd.f32 %v1811, %v1817
      %v1882 = vadd.f32 %v1812, %v1817
      %1884 = vset.pattern.permute.xlu0 0
      %1885 = vperm.xlu0 %1884, %v1300
      %v1886 = vpop.permute.xlu0 %1885
      %1889 = vset.pattern.permute.xlu0 0
      %1890 = vperm.xlu0 %1889, %v1301
      %v1891 = vpop.permute.xlu0 %1890
      %1894 = vset.pattern.permute.xlu0 0
      %1895 = vperm.xlu0 %1894, %v1302
      %v1896 = vpop.permute.xlu0 %1895
      %1899 = vset.pattern.permute.xlu0 0
      %1900 = vperm.xlu0 %1899, %v1303
      %v1901 = vpop.permute.xlu0 %1900
      %1904 = vset.pattern.permute.xlu0 0
      %1905 = vperm.xlu0 %1904, %v1304
      %v1906 = vpop.permute.xlu0 %1905
      %1909 = vset.pattern.permute.xlu0 0
      %1910 = vperm.xlu0 %1909, %v1305
      %v1911 = vpop.permute.xlu0 %1910
      %1914 = vset.pattern.permute.xlu0 0
      %1915 = vperm.xlu0 %1914, %v1306
      %v1916 = vpop.permute.xlu0 %1915
      %1919 = vset.pattern.permute.xlu0 0
      %1920 = vperm.xlu0 %1919, %v1307
      %v1921 = vpop.permute.xlu0 %1920
      %1924 = vset.pattern.permute.xlu0 0
      %1925 = vperm.xlu0 %1924, %v1308
      %v1926 = vpop.permute.xlu0 %1925
      %1929 = vset.pattern.permute.xlu0 0
      %1930 = vperm.xlu0 %1929, %v1309
      %v1931 = vpop.permute.xlu0 %1930
      %1934 = vset.pattern.permute.xlu0 0
      %1935 = vperm.xlu0 %1934, %v1310
      %v1936 = vpop.permute.xlu0 %1935
      %1939 = vset.pattern.permute.xlu0 0
      %1940 = vperm.xlu0 %1939, %v1311
      %v1941 = vpop.permute.xlu0 %1940
      %1944 = vset.pattern.permute.xlu0 0
      %1945 = vperm.xlu0 %1944, %v1312
      %v1946 = vpop.permute.xlu0 %1945
      %1949 = vset.pattern.permute.xlu0 0
      %1950 = vperm.xlu0 %1949, %v1313
      %v1951 = vpop.permute.xlu0 %1950
      %1954 = vset.pattern.permute.xlu0 0
      %1955 = vperm.xlu0 %1954, %v1314
      %v1956 = vpop.permute.xlu0 %1955
      %1959 = vset.pattern.permute.xlu0 0
      %1960 = vperm.xlu0 %1959, %v1315
      %v1961 = vpop.permute.xlu0 %1960
      %1964 = vset.pattern.permute.xlu0 0
      %1965 = vperm.xlu0 %1964, %v1316
      %v1966 = vpop.permute.xlu0 %1965
      %1969 = vset.pattern.permute.xlu0 0
      %1970 = vperm.xlu0 %1969, %v1317
      %v1971 = vpop.permute.xlu0 %1970
      %1974 = vset.pattern.permute.xlu0 0
      %1975 = vperm.xlu0 %1974, %v1318
      %v1976 = vpop.permute.xlu0 %1975
      %1979 = vset.pattern.permute.xlu0 0
      %1980 = vperm.xlu0 %1979, %v1319
      %v1981 = vpop.permute.xlu0 %1980
      %1984 = vset.pattern.permute.xlu0 0
      %1985 = vperm.xlu0 %1984, %v1320
      %v1986 = vpop.permute.xlu0 %1985
      %1989 = vset.pattern.permute.xlu0 0
      %1990 = vperm.xlu0 %1989, %v1321
      %v1991 = vpop.permute.xlu0 %1990
      %1994 = vset.pattern.permute.xlu0 0
      %1995 = vperm.xlu0 %1994, %v1322
      %v1996 = vpop.permute.xlu0 %1995
      %1999 = vset.pattern.permute.xlu0 0
      %2000 = vperm.xlu0 %1999, %v1323
      %v2001 = vpop.permute.xlu0 %2000
      %2004 = vset.pattern.permute.xlu0 0
      %2005 = vperm.xlu0 %2004, %v1324
      %v2006 = vpop.permute.xlu0 %2005
      %2009 = vset.pattern.permute.xlu0 0
      %2010 = vperm.xlu0 %2009, %v1325
      %v2011 = vpop.permute.xlu0 %2010
      %2014 = vset.pattern.permute.xlu0 0
      %2015 = vperm.xlu0 %2014, %v1326
      %v2016 = vpop.permute.xlu0 %2015
      %2019 = vset.pattern.permute.xlu0 0
      %2020 = vperm.xlu0 %2019, %v1327
      %v2021 = vpop.permute.xlu0 %2020
      %2024 = vset.pattern.permute.xlu0 0
      %2025 = vperm.xlu0 %2024, %v1328
      %v2026 = vpop.permute.xlu0 %2025
      %2029 = vset.pattern.permute.xlu0 0
      %2030 = vperm.xlu0 %2029, %v1329
      %v2031 = vpop.permute.xlu0 %2030
      %2034 = vset.pattern.permute.xlu0 0
      %2035 = vperm.xlu0 %2034, %v1330
      %v2036 = vpop.permute.xlu0 %2035
      %2039 = vset.pattern.permute.xlu0 0
      %2040 = vperm.xlu0 %2039, %v1331
      %v2041 = vpop.permute.xlu0 %2040
      %2044 = vset.pattern.permute.xlu0 0
      %2045 = vperm.xlu0 %2044, %v1332
      %v2046 = vpop.permute.xlu0 %2045
      %2049 = vset.pattern.permute.xlu0 0
      %2050 = vperm.xlu0 %2049, %v1333
      %v2051 = vpop.permute.xlu0 %2050
      %2054 = vset.pattern.permute.xlu0 0
      %2055 = vperm.xlu0 %2054, %v1334
      %v2056 = vpop.permute.xlu0 %2055
      %2059 = vset.pattern.permute.xlu0 0
      %2060 = vperm.xlu0 %2059, %v1335
      %v2061 = vpop.permute.xlu0 %2060
      %2064 = vset.pattern.permute.xlu0 0
      %2065 = vperm.xlu0 %2064, %v1336
      %v2066 = vpop.permute.xlu0 %2065
      %2069 = vset.pattern.permute.xlu0 0
      %2070 = vperm.xlu0 %2069, %v1337
      %v2071 = vpop.permute.xlu0 %2070
      %2074 = vset.pattern.permute.xlu0 0
      %2075 = vperm.xlu0 %2074, %v1338
      %v2076 = vpop.permute.xlu0 %2075
      %2079 = vset.pattern.permute.xlu0 0
      %2080 = vperm.xlu0 %2079, %v1339
      %v2081 = vpop.permute.xlu0 %2080
      %2084 = vset.pattern.permute.xlu0 0
      %2085 = vperm.xlu0 %2084, %v1340
      %v2086 = vpop.permute.xlu0 %2085
      %2089 = vset.pattern.permute.xlu0 0
      %2090 = vperm.xlu0 %2089, %v1341
      %v2091 = vpop.permute.xlu0 %2090
      %2094 = vset.pattern.permute.xlu0 0
      %2095 = vperm.xlu0 %2094, %v1342
      %v2096 = vpop.permute.xlu0 %2095
      %2099 = vset.pattern.permute.xlu0 0
      %2100 = vperm.xlu0 %2099, %v1343
      %v2101 = vpop.permute.xlu0 %2100
      %2104 = vset.pattern.permute.xlu0 0
      %2105 = vperm.xlu0 %2104, %v1344
      %v2106 = vpop.permute.xlu0 %2105
      %2109 = vset.pattern.permute.xlu0 0
      %2110 = vperm.xlu0 %2109, %v1345
      %v2111 = vpop.permute.xlu0 %2110
      %2114 = vset.pattern.permute.xlu0 0
      %2115 = vperm.xlu0 %2114, %v1346
      %v2116 = vpop.permute.xlu0 %2115
      %2119 = vset.pattern.permute.xlu0 0
      %2120 = vperm.xlu0 %2119, %v1347
      %v2121 = vpop.permute.xlu0 %2120
      %2124 = vset.pattern.permute.xlu0 0
      %2125 = vperm.xlu0 %2124, %v1348
      %v2126 = vpop.permute.xlu0 %2125
      %2129 = vset.pattern.permute.xlu0 0
      %2130 = vperm.xlu0 %2129, %v1349
      %v2131 = vpop.permute.xlu0 %2130
      %2134 = vset.pattern.permute.xlu0 0
      %2135 = vperm.xlu0 %2134, %v1350
      %v2136 = vpop.permute.xlu0 %2135
      %2139 = vset.pattern.permute.xlu0 0
      %2140 = vperm.xlu0 %2139, %v1351
      %v2141 = vpop.permute.xlu0 %2140
      %2144 = vset.pattern.permute.xlu0 0
      %2145 = vperm.xlu0 %2144, %v1352
      %v2146 = vpop.permute.xlu0 %2145
      %2149 = vset.pattern.permute.xlu0 0
      %2150 = vperm.xlu0 %2149, %v1353
      %v2151 = vpop.permute.xlu0 %2150
      %2154 = vset.pattern.permute.xlu0 0
      %2155 = vperm.xlu0 %2154, %v1354
      %v2156 = vpop.permute.xlu0 %2155
      %2159 = vset.pattern.permute.xlu0 0
      %2160 = vperm.xlu0 %2159, %v1355
      %v2161 = vpop.permute.xlu0 %2160
      %2164 = vset.pattern.permute.xlu0 0
      %2165 = vperm.xlu0 %2164, %v1356
      %v2166 = vpop.permute.xlu0 %2165
      %2169 = vset.pattern.permute.xlu0 0
      %2170 = vperm.xlu0 %2169, %v1357
      %v2171 = vpop.permute.xlu0 %2170
      %2174 = vset.pattern.permute.xlu0 0
      %2175 = vperm.xlu0 %2174, %v1358
      %v2176 = vpop.permute.xlu0 %2175
      %2179 = vset.pattern.permute.xlu0 0
      %2180 = vperm.xlu0 %2179, %v1359
      %v2181 = vpop.permute.xlu0 %2180
      %2184 = vset.pattern.permute.xlu0 0
      %2185 = vperm.xlu0 %2184, %v1360
      %v2186 = vpop.permute.xlu0 %2185
      %2189 = vset.pattern.permute.xlu0 0
      %2190 = vperm.xlu0 %2189, %v1361
      %v2191 = vpop.permute.xlu0 %2190
      %2194 = vset.pattern.permute.xlu0 0
      %2195 = vperm.xlu0 %2194, %v1362
      %v2196 = vpop.permute.xlu0 %2195
      %2199 = vset.pattern.permute.xlu0 0
      %2200 = vperm.xlu0 %2199, %v1363
      %v2201 = vpop.permute.xlu0 %2200
      %v2203 = vmul.f32 %v1819, %v1886
      %v2204 = vmul.f32 %v1820, %v1891
      %v2205 = vmul.f32 %v1821, %v1896
      %v2206 = vmul.f32 %v1822, %v1901
      %v2207 = vmul.f32 %v1823, %v1906
      %v2208 = vmul.f32 %v1824, %v1911
      %v2209 = vmul.f32 %v1825, %v1916
      %v2210 = vmul.f32 %v1826, %v1921
      %v2211 = vmul.f32 %v1827, %v1926
      %v2212 = vmul.f32 %v1828, %v1931
      %v2213 = vmul.f32 %v1829, %v1936
      %v2214 = vmul.f32 %v1830, %v1941
      %v2215 = vmul.f32 %v1831, %v1946
      %v2216 = vmul.f32 %v1832, %v1951
      %v2217 = vmul.f32 %v1833, %v1956
      %v2218 = vmul.f32 %v1834, %v1961
      %v2219 = vmul.f32 %v1835, %v1966
      %v2220 = vmul.f32 %v1836, %v1971
      %v2221 = vmul.f32 %v1837, %v1976
      %v2222 = vmul.f32 %v1838, %v1981
      %v2223 = vmul.f32 %v1839, %v1986
      %v2224 = vmul.f32 %v1840, %v1991
      %v2225 = vmul.f32 %v1841, %v1996
      %v2226 = vmul.f32 %v1842, %v2001
      %v2227 = vmul.f32 %v1843, %v2006
      %v2228 = vmul.f32 %v1844, %v2011
      %v2229 = vmul.f32 %v1845, %v2016
      %v2230 = vmul.f32 %v1846, %v2021
      %v2231 = vmul.f32 %v1847, %v2026
      %v2232 = vmul.f32 %v1848, %v2031
      %v2233 = vmul.f32 %v1849, %v2036
      %v2234 = vmul.f32 %v1850, %v2041
      %v2235 = vmul.f32 %v1851, %v2046
      %v2236 = vmul.f32 %v1852, %v2051
      %v2237 = vmul.f32 %v1853, %v2056
      %v2238 = vmul.f32 %v1854, %v2061
      %v2239 = vmul.f32 %v1855, %v2066
      %v2240 = vmul.f32 %v1856, %v2071
      %v2241 = vmul.f32 %v1857, %v2076
      %v2242 = vmul.f32 %v1858, %v2081
      %v2243 = vmul.f32 %v1859, %v2086
      %v2244 = vmul.f32 %v1860, %v2091
      %v2245 = vmul.f32 %v1861, %v2096
      %v2246 = vmul.f32 %v1862, %v2101
      %v2247 = vmul.f32 %v1863, %v2106
      %v2248 = vmul.f32 %v1864, %v2111
      %v2249 = vmul.f32 %v1865, %v2116
      %v2250 = vmul.f32 %v1866, %v2121
      %v2251 = vmul.f32 %v1867, %v2126
      %v2252 = vmul.f32 %v1868, %v2131
      %v2253 = vmul.f32 %v1869, %v2136
      %v2254 = vmul.f32 %v1870, %v2141
      %v2255 = vmul.f32 %v1871, %v2146
      %v2256 = vmul.f32 %v1872, %v2151
      %v2257 = vmul.f32 %v1873, %v2156
      %v2258 = vmul.f32 %v1874, %v2161
      %v2259 = vmul.f32 %v1875, %v2166
      %v2260 = vmul.f32 %v1876, %v2171
      %v2261 = vmul.f32 %v1877, %v2176
      %v2262 = vmul.f32 %v1878, %v2181
      %v2263 = vmul.f32 %v1879, %v2186
      %v2264 = vmul.f32 %v1880, %v2191
      %v2265 = vmul.f32 %v1881, %v2196
      %v2266 = vmul.f32 %v1882, %v2201
      %2267 = vst [vmem:[#allocation3] sm:$0xff] %v2203
      %2268 = vst [vmem:[#allocation3 + $0x8] sm:$0xff] %v2204
      %2269 = vst [vmem:[#allocation3 + $0x10] sm:$0xff] %v2205
      %2270 = vst [vmem:[#allocation3 + $0x18] sm:$0xff] %v2206
      %2271 = vst [vmem:[#allocation3 + $0x20] sm:$0xff] %v2207
      %2272 = vst [vmem:[#allocation3 + $0x28] sm:$0xff] %v2208
      %2273 = vst [vmem:[#allocation3 + $0x30] sm:$0xff] %v2209
      %2274 = vst [vmem:[#allocation3 + $0x38] sm:$0xff] %v2210
      %2275 = vst [vmem:[#allocation3 + $0x40] sm:$0xff] %v2211
      %2276 = vst [vmem:[#allocation3 + $0x48] sm:$0xff] %v2212
      %2277 = vst [vmem:[#allocation3 + $0x50] sm:$0xff] %v2213
      %2278 = vst [vmem:[#allocation3 + $0x58] sm:$0xff] %v2214
      %2279 = vst [vmem:[#allocation3 + $0x60] sm:$0xff] %v2215
      %2280 = vst [vmem:[#allocation3 + $0x68] sm:$0xff] %v2216
      %2281 = vst [vmem:[#allocation3 + $0x70] sm:$0xff] %v2217
      %2282 = vst [vmem:[#allocation3 + $0x78] sm:$0xff] %v2218
      %2283 = vst [vmem:[#allocation3 + $0x80] sm:$0xff] %v2219
      %2284 = vst [vmem:[#allocation3 + $0x88] sm:$0xff] %v2220
      %2285 = vst [vmem:[#allocation3 + $0x90] sm:$0xff] %v2221
      %2286 = vst [vmem:[#allocation3 + $0x98] sm:$0xff] %v2222
      %2287 = vst [vmem:[#allocation3 + $0xa0] sm:$0xff] %v2223
      %2288 = vst [vmem:[#allocation3 + $0xa8] sm:$0xff] %v2224
      %2289 = vst [vmem:[#allocation3 + $0xb0] sm:$0xff] %v2225
      %2290 = vst [vmem:[#allocation3 + $0xb8] sm:$0xff] %v2226
      %2291 = vst [vmem:[#allocation3 + $0xc0] sm:$0xff] %v2227
      %2292 = vst [vmem:[#allocation3 + $0xc8] sm:$0xff] %v2228
      %2293 = vst [vmem:[#allocation3 + $0xd0] sm:$0xff] %v2229
      %2294 = vst [vmem:[#allocation3 + $0xd8] sm:$0xff] %v2230
      %2295 = vst [vmem:[#allocation3 + $0xe0] sm:$0xff] %v2231
      %2296 = vst [vmem:[#allocation3 + $0xe8] sm:$0xff] %v2232
      %2297 = vst [vmem:[#allocation3 + $0xf0] sm:$0xff] %v2233
      %2298 = vst [vmem:[#allocation3 + $0xf8] sm:$0xff] %v2234
      %2299 = vst [vmem:[#allocation3 + $0x100] sm:$0xff] %v2235
      %2300 = vst [vmem:[#allocation3 + $0x108] sm:$0xff] %v2236
      %2301 = vst [vmem:[#allocation3 + $0x110] sm:$0xff] %v2237
      %2302 = vst [vmem:[#allocation3 + $0x118] sm:$0xff] %v2238
      %2303 = vst [vmem:[#allocation3 + $0x120] sm:$0xff] %v2239
      %2304 = vst [vmem:[#allocation3 + $0x128] sm:$0xff] %v2240
      %2305 = vst [vmem:[#allocation3 + $0x130] sm:$0xff] %v2241
      %2306 = vst [vmem:[#allocation3 + $0x138] sm:$0xff] %v2242
      %2307 = vst [vmem:[#allocation3 + $0x140] sm:$0xff] %v2243
      %2308 = vst [vmem:[#allocation3 + $0x148] sm:$0xff] %v2244
      %2309 = vst [vmem:[#allocation3 + $0x150] sm:$0xff] %v2245
      %2310 = vst [vmem:[#allocation3 + $0x158] sm:$0xff] %v2246
      %2311 = vst [vmem:[#allocation3 + $0x160] sm:$0xff] %v2247
      %2312 = vst [vmem:[#allocation3 + $0x168] sm:$0xff] %v2248
      %2313 = vst [vmem:[#allocation3 + $0x170] sm:$0xff] %v2249
      %2314 = vst [vmem:[#allocation3 + $0x178] sm:$0xff] %v2250
      %2315 = vst [vmem:[#allocation3 + $0x180] sm:$0xff] %v2251
      %2316 = vst [vmem:[#allocation3 + $0x188] sm:$0xff] %v2252
      %2317 = vst [vmem:[#allocation3 + $0x190] sm:$0xff] %v2253
      %2318 = vst [vmem:[#allocation3 + $0x198] sm:$0xff] %v2254
      %2319 = vst [vmem:[#allocation3 + $0x1a0] sm:$0xff] %v2255
      %2320 = vst [vmem:[#allocation3 + $0x1a8] sm:$0xff] %v2256
      %2321 = vst [vmem:[#allocation3 + $0x1b0] sm:$0xff] %v2257
      %2322 = vst [vmem:[#allocation3 + $0x1b8] sm:$0xff] %v2258
      %2323 = vst [vmem:[#allocation3 + $0x1c0] sm:$0xff] %v2259
      %2324 = vst [vmem:[#allocation3 + $0x1c8] sm:$0xff] %v2260
      %2325 = vst [vmem:[#allocation3 + $0x1d0] sm:$0xff] %v2261
      %2326 = vst [vmem:[#allocation3 + $0x1d8] sm:$0xff] %v2262
      %2327 = vst [vmem:[#allocation3 + $0x1e0] sm:$0xff] %v2263
      %2328 = vst [vmem:[#allocation3 + $0x1e8] sm:$0xff] %v2264
      %2329 = vst [vmem:[#allocation3 + $0x1f0] sm:$0xff] %v2265
      %2330 = vst [vmem:[#allocation3 + $0x1f8] sm:$0xff] %v2266
    $region25: #{tpu_custom_call.1} parent=1 // pred_fallthru
      _
    // Predicated region
    $region26: #{tpu_custom_call.1} parent=1 // pred_check
      _
    $region27: #{tpu_custom_call.1} parent=1 // pred_check_branch
      %2332 = sbr.rel (0) target = $region29
    $region28: #{tpu_custom_call.1} parent=1 // pred_region
      %s2334 = ssub.s32 8192, 8192
      %2335 = vsyncadd [#allocation4], %s2334
      %s2336 = sshll.u32 [#allocation3], 4
      %s2337 = int_to_ptr.vmem [resolvable:$true] %s2336
      %2342 = dma.vmem_to_hbm [thread:$0]  %s2337, 8192, %s4, [#allocation4], 128, 128, 8
    $region29: #{tpu_custom_call.1} parent=1 // pred_fallthru
      _
    // Predicated region
    $region30: #{tpu_custom_call.1} parent=1 // pred_check
      _
    $region31: #{tpu_custom_call.1} parent=1 // pred_check_branch
      %2344 = sbr.rel (0) target = $region33
    $region32: #{tpu_custom_call.1} parent=1 // pred_region
      %2345 = dma.done [#allocation4], 8192
    $region33: #{tpu_custom_call.1} parent=1 // pred_fallthru
      _
    %2346 = vsyncpa [#allocation4], 1

</llo_original>
